<compile_context>
chip_gen: v7x
topology: tpu7x:2x2x1
jax: 0.10.0
libtpu: 0.0.40
codegen_flags: <defaults>
</compile_context>

<pallas_src>
import functools

import jax
import jax.numpy as jnp
from jax.experimental import pallas as pl
from jax.experimental.pallas import tpu as pltpu


_VMEM_SPEC = pl.BlockSpec(memory_space=pltpu.MemorySpace.VMEM)


# ----------------------------------------------------------------------------
# Fused kernel (all LSTM layers + linear head)
# ----------------------------------------------------------------------------
def _make_fused_kernel(layer_num, batch, seq_length, hidden_size):
    B, T, H = batch, seq_length, hidden_size

    def kernel(x_ref, *refs):
        # refs = [w_ih_0, w_hh_0, b_0, ..., w_ih_{L-1}, w_hh_{L-1}, b_{L-1},
        #         w_lin, b_lin, out_ref]
        out_ref = refs[-1]
        w_lin_ref = refs[3 * layer_num]
        b_lin_ref = refs[3 * layer_num + 1]

        seq = x_ref[...]                                  # (T*B, D_l), time-major
        hs = None
        for l in range(layer_num):
            w_ih = refs[3 * l][...]                       # (D_l, 4H)
            w_hh = refs[3 * l + 1][...]                   # (H, 4H)
            bias = refs[3 * l + 2][...]                   # (1, 4H)

            # Hoisted input projection: one matmul for the whole sequence
            # (no sequential dependence), bias folded in.
            xg = jnp.dot(seq, w_ih,
                         preferred_element_type=jnp.float32) + bias  # (T*B, 4H)

            h = jnp.zeros((B, H), jnp.float32)
            c = jnp.zeros((B, H), jnp.float32)
            hs = []
            # T is tiny and static -> fully unrolled serial recurrence.
            for t in range(T):
                g = xg[t * B:(t + 1) * B, :] + jnp.dot(
                    h, w_hh, preferred_element_type=jnp.float32)     # (B, 4H)
                # Whole-vreg activations, then narrow gate selects.
                sig = jax.nn.sigmoid(g)
                tnh = jnp.tanh(g)
                i_g = sig[:, 0 * H:1 * H]
                f_g = sig[:, 1 * H:2 * H]
                g_g = tnh[:, 2 * H:3 * H]
                o_g = sig[:, 3 * H:4 * H]
                c = f_g * c + i_g * g_g
                h = o_g * jnp.tanh(c)
                hs.append(h)

            if l + 1 < layer_num:
                # Next layer's input sequence, time-major (T*B, H).
                seq = jnp.concatenate(hs, axis=0)

        # Flatten last layer's hidden states to (B, T*H) in (t, h) order,
        # matching torch's x.reshape(-1, hidden_size * seq_length).
        h_flat = jnp.concatenate(hs, axis=1)              # (B, T*H)
        out_ref[...] = (
            jnp.dot(h_flat, w_lin_ref[...], preferred_element_type=jnp.float32)
            + b_lin_ref[...]
        )

    return kernel


# ----------------------------------------------------------------------------
# Wrapper
# ----------------------------------------------------------------------------
@jax.jit
def test_model_2_forward(x, params):
    """Pallas equivalent of TestModel_2.forward — one fused pallas_call."""
    B, T, D = x.shape
    layers = params["lstm_layers"]
    layer_num = len(layers)
    H = layers[0][1].shape[0]                             # w_hh_t is (H, 4H)

    # Layout plumbing only: present the sequence time-major so per-step slices
    # of the hoisted projection are contiguous sublane blocks.
    x_tm = jnp.transpose(x, (1, 0, 2)).reshape(T * B, D)

    flat = []
    for (w_ih_t, w_hh_t, bias) in layers:
        flat += [w_ih_t, w_hh_t, bias]
    flat += [params["linear_w_t"], params["linear_b"]]

    kernel = _make_fused_kernel(layer_num, B, T, H)
    out_dim = params["linear_w_t"].shape[1]
    return pl.pallas_call(
        kernel,
        out_shape=jax.ShapeDtypeStruct((B, out_dim), jnp.float32),
        in_specs=[_VMEM_SPEC] * (1 + len(flat)),
        out_specs=_VMEM_SPEC,
    )(x_tm, *flat)


# ----------------------------------------------------------------------------
# Deterministic parameter init (mirrors PyTorch default U(-1/sqrt(H), 1/sqrt(H)))
# ----------------------------------------------------------------------------
def init_params(key, input_size, layer_num, hidden_size, seq_length):
    params = {"lstm_layers": []}
    k_lstm = 1.0 / jnp.sqrt(hidden_size)
    for layer in range(layer_num):
        in_dim = input_size if layer == 0 else hidden_size
        key, k1, k2, k3, k4 = jax.random.split(key, 5)
        w_ih = jax.random.uniform(k1, (4 * hidden_size, in_dim), jnp.float32,
                                  -k_lstm, k_lstm)
        w_hh = jax.random.uniform(k2, (4 * hidden_size, hidden_size), jnp.float32,
                                  -k_lstm, k_lstm)
        b_ih = jax.random.uniform(k3, (4 * hidden_size,), jnp.float32, -k_lstm, k_lstm)
        b_hh = jax.random.uniform(k4, (4 * hidden_size,), jnp.float32, -k_lstm, k_lstm)
        params["lstm_layers"].append(
            (w_ih.T, w_hh.T, (b_ih + b_hh).reshape(1, 4 * hidden_size))
        )
    in_features = hidden_size * seq_length
    k_lin = 1.0 / jnp.sqrt(in_features)
    key, k1, k2 = jax.random.split(key, 3)
    w_lin = jax.random.uniform(k1, (2, in_features), jnp.float32, -k_lin, k_lin)
    b_lin = jax.random.uniform(k2, (2,), jnp.float32, -k_lin, k_lin)
    params["linear_w_t"] = w_lin.T
    params["linear_b"] = b_lin.reshape(1, 2)
    return params


# ----------------------------------------------------------------------------
# Pure-JAX reference (same math, no Pallas) for a sanity check
# ----------------------------------------------------------------------------
def reference_forward(x, params, hidden_size, seq_length):
    h_seq = x
    B = x.shape[0]
    for (w_ih_t, w_hh_t, bias) in params["lstm_layers"]:
        H = hidden_size
        h = jnp.zeros((B, H), jnp.float32)
        c = jnp.zeros((B, H), jnp.float32)
        outs = []
        for t in range(h_seq.shape[1]):
            gates = h_seq[:, t, :] @ w_ih_t + h @ w_hh_t + bias
            i_g = jax.nn.sigmoid(gates[:, 0 * H:1 * H])
            f_g = jax.nn.sigmoid(gates[:, 1 * H:2 * H])
            g_g = jnp.tanh(gates[:, 2 * H:3 * H])
            o_g = jax.nn.sigmoid(gates[:, 3 * H:4 * H])
            c = f_g * c + i_g * g_g
            h = o_g * jnp.tanh(c)
            outs.append(h)
        h_seq = jnp.stack(outs, axis=1)
    flat = h_seq.reshape(B, hidden_size * seq_length)
    return flat @ params["linear_w_t"] + params["linear_b"]


# ----------------------------------------------------------------------------
if __name__ == "__main__":
    INPUT_SIZE = 16
    LAYER_NUM = 2
    HIDDEN_SIZE = 32
    SEQ_LENGTH = 8
    BATCH = 2

    key = jax.random.PRNGKey(0)
    key, xk = jax.random.split(key)
    x = jax.random.normal(xk, (BATCH, SEQ_LENGTH, INPUT_SIZE), jnp.float32)

    params = init_params(key, INPUT_SIZE, LAYER_NUM, HIDDEN_SIZE, SEQ_LENGTH)

    out = test_model_2_forward(x, params)
    out = jax.block_until_ready(out)
    assert out.shape == (BATCH, 2), out.shape

    ref = reference_forward(x, params, HIDDEN_SIZE, SEQ_LENGTH)
    assert jnp.allclose(out, ref, atol=1e-4, rtol=1e-4), (out, ref)

    print("KERNEL_OK")
</pallas_src>

<mosaic_0001>
module attributes {stable_mosaic.version = 11 : i64} {
  func.func @kernel(%arg0: memref<16x16xf32, #tpu.memory_space<vmem>>, %arg1: memref<16x128xf32, #tpu.memory_space<vmem>>, %arg2: memref<32x128xf32, #tpu.memory_space<vmem>>, %arg3: memref<1x128xf32, #tpu.memory_space<vmem>>, %arg4: memref<32x128xf32, #tpu.memory_space<vmem>>, %arg5: memref<32x128xf32, #tpu.memory_space<vmem>>, %arg6: memref<1x128xf32, #tpu.memory_space<vmem>>, %arg7: memref<256x2xf32, #tpu.memory_space<vmem>>, %arg8: memref<1x2xf32, #tpu.memory_space<vmem>>, %arg9: memref<2x2xf32, #tpu.memory_space<vmem>>) attributes {dimension_semantics = [], scalar_prefetch = 0 : i64, scratch_operands = 0 : i64, tpu.core_type = #tpu.core_type<tc>} {
    %c0 = arith.constant 0 : index
    %c0_0 = arith.constant 0 : index
    %0 = vector.load %arg0[%c0, %c0_0] : memref<16x16xf32, #tpu.memory_space<vmem>>, vector<16x16xf32>
    %c0_1 = arith.constant 0 : index
    %c0_2 = arith.constant 0 : index
    %1 = vector.load %arg1[%c0_1, %c0_2] : memref<16x128xf32, #tpu.memory_space<vmem>>, vector<16x128xf32>
    %c0_3 = arith.constant 0 : index
    %c0_4 = arith.constant 0 : index
    %2 = vector.load %arg2[%c0_3, %c0_4] : memref<32x128xf32, #tpu.memory_space<vmem>>, vector<32x128xf32>
    %c0_5 = arith.constant 0 : index
    %c0_6 = arith.constant 0 : index
    %3 = vector.load %arg3[%c0_5, %c0_6] : memref<1x128xf32, #tpu.memory_space<vmem>>, vector<1x128xf32>
    %cst = arith.constant dense<0.000000e+00> : vector<16x128xf32>
    %4 = tpu.matmul %0, %1, %cst {dimension_numbers = #tpu.dot_dimension_numbers<[1], [0], [0], [1], [0, 0, 1, 1], [], []>} : vector<16x16xf32>, vector<16x128xf32>, vector<16x128xf32> -> vector<16x128xf32>
    %5 = vector.broadcast %3 : vector<1x128xf32> to vector<16x128xf32>
    %6 = arith.addf %4, %5 : vector<16x128xf32>
    %cst_7 = arith.constant 0.000000e+00 : f32
    %7 = vector.broadcast %cst_7 : f32 to vector<2x32xf32>
    %cst_8 = arith.constant 0.000000e+00 : f32
    %8 = vector.broadcast %cst_8 : f32 to vector<2x32xf32>
    %9 = vector.extract_strided_slice %6 {offsets = [0, 0], sizes = [2, 128], strides = [1, 1]} : vector<16x128xf32> to vector<2x128xf32>
    %cst_9 = arith.constant dense<0.000000e+00> : vector<2x128xf32>
    %10 = tpu.matmul %7, %2, %cst_9 {dimension_numbers = #tpu.dot_dimension_numbers<[1], [0], [0], [1], [0, 0, 1, 1], [], []>} : vector<2x32xf32>, vector<32x128xf32>, vector<2x128xf32> -> vector<2x128xf32>
    %11 = arith.addf %9, %10 : vector<2x128xf32>
    %12 = arith.negf %11 : vector<2x128xf32>
    %13 = math.exp %12 : vector<2x128xf32>
    %cst_10 = arith.constant 1.000000e+00 : f32
    %14 = vector.broadcast %cst_10 : f32 to vector<2x128xf32>
    %15 = arith.addf %14, %13 : vector<2x128xf32>
    %16 = arith.divf %14, %15 : vector<2x128xf32>
    %17 = math.tanh %11 : vector<2x128xf32>
    %18 = vector.extract_strided_slice %16 {offsets = [0, 0], sizes = [2, 32], strides = [1, 1]} : vector<2x128xf32> to vector<2x32xf32>
    %19 = vector.extract_strided_slice %16 {offsets = [0, 32], sizes = [2, 32], strides = [1, 1]} : vector<2x128xf32> to vector<2x32xf32>
    %20 = vector.extract_strided_slice %17 {offsets = [0, 64], sizes = [2, 32], strides = [1, 1]} : vector<2x128xf32> to vector<2x32xf32>
    %21 = vector.extract_strided_slice %16 {offsets = [0, 96], sizes = [2, 32], strides = [1, 1]} : vector<2x128xf32> to vector<2x32xf32>
    %22 = arith.mulf %19, %8 : vector<2x32xf32>
    %23 = arith.mulf %18, %20 : vector<2x32xf32>
    %24 = arith.addf %22, %23 : vector<2x32xf32>
    %25 = math.tanh %24 : vector<2x32xf32>
    %26 = arith.mulf %21, %25 : vector<2x32xf32>
    %27 = vector.extract_strided_slice %6 {offsets = [2, 0], sizes = [2, 128], strides = [1, 1]} : vector<16x128xf32> to vector<2x128xf32>
    %cst_11 = arith.constant dense<0.000000e+00> : vector<2x128xf32>
    %28 = tpu.matmul %26, %2, %cst_11 {dimension_numbers = #tpu.dot_dimension_numbers<[1], [0], [0], [1], [0, 0, 1, 1], [], []>} : vector<2x32xf32>, vector<32x128xf32>, vector<2x128xf32> -> vector<2x128xf32>
    %29 = arith.addf %27, %28 : vector<2x128xf32>
    %30 = arith.negf %29 : vector<2x128xf32>
    %31 = math.exp %30 : vector<2x128xf32>
    %cst_12 = arith.constant 1.000000e+00 : f32
    %32 = vector.broadcast %cst_12 : f32 to vector<2x128xf32>
    %33 = arith.addf %32, %31 : vector<2x128xf32>
    %34 = arith.divf %32, %33 : vector<2x128xf32>
    %35 = math.tanh %29 : vector<2x128xf32>
    %36 = vector.extract_strided_slice %34 {offsets = [0, 0], sizes = [2, 32], strides = [1, 1]} : vector<2x128xf32> to vector<2x32xf32>
    %37 = vector.extract_strided_slice %34 {offsets = [0, 32], sizes = [2, 32], strides = [1, 1]} : vector<2x128xf32> to vector<2x32xf32>
    %38 = vector.extract_strided_slice %35 {offsets = [0, 64], sizes = [2, 32], strides = [1, 1]} : vector<2x128xf32> to vector<2x32xf32>
    %39 = vector.extract_strided_slice %34 {offsets = [0, 96], sizes = [2, 32], strides = [1, 1]} : vector<2x128xf32> to vector<2x32xf32>
    %40 = arith.mulf %37, %24 : vector<2x32xf32>
    %41 = arith.mulf %36, %38 : vector<2x32xf32>
    %42 = arith.addf %40, %41 : vector<2x32xf32>
    %43 = math.tanh %42 : vector<2x32xf32>
    %44 = arith.mulf %39, %43 : vector<2x32xf32>
    %45 = vector.extract_strided_slice %6 {offsets = [4, 0], sizes = [2, 128], strides = [1, 1]} : vector<16x128xf32> to vector<2x128xf32>
    %cst_13 = arith.constant dense<0.000000e+00> : vector<2x128xf32>
    %46 = tpu.matmul %44, %2, %cst_13 {dimension_numbers = #tpu.dot_dimension_numbers<[1], [0], [0], [1], [0, 0, 1, 1], [], []>} : vector<2x32xf32>, vector<32x128xf32>, vector<2x128xf32> -> vector<2x128xf32>
    %47 = arith.addf %45, %46 : vector<2x128xf32>
    %48 = arith.negf %47 : vector<2x128xf32>
    %49 = math.exp %48 : vector<2x128xf32>
    %cst_14 = arith.constant 1.000000e+00 : f32
    %50 = vector.broadcast %cst_14 : f32 to vector<2x128xf32>
    %51 = arith.addf %50, %49 : vector<2x128xf32>
    %52 = arith.divf %50, %51 : vector<2x128xf32>
    %53 = math.tanh %47 : vector<2x128xf32>
    %54 = vector.extract_strided_slice %52 {offsets = [0, 0], sizes = [2, 32], strides = [1, 1]} : vector<2x128xf32> to vector<2x32xf32>
    %55 = vector.extract_strided_slice %52 {offsets = [0, 32], sizes = [2, 32], strides = [1, 1]} : vector<2x128xf32> to vector<2x32xf32>
    %56 = vector.extract_strided_slice %53 {offsets = [0, 64], sizes = [2, 32], strides = [1, 1]} : vector<2x128xf32> to vector<2x32xf32>
    %57 = vector.extract_strided_slice %52 {offsets = [0, 96], sizes = [2, 32], strides = [1, 1]} : vector<2x128xf32> to vector<2x32xf32>
    %58 = arith.mulf %55, %42 : vector<2x32xf32>
    %59 = arith.mulf %54, %56 : vector<2x32xf32>
    %60 = arith.addf %58, %59 : vector<2x32xf32>
    %61 = math.tanh %60 : vector<2x32xf32>
    %62 = arith.mulf %57, %61 : vector<2x32xf32>
    %63 = vector.extract_strided_slice %6 {offsets = [6, 0], sizes = [2, 128], strides = [1, 1]} : vector<16x128xf32> to vector<2x128xf32>
    %cst_15 = arith.constant dense<0.000000e+00> : vector<2x128xf32>
    %64 = tpu.matmul %62, %2, %cst_15 {dimension_numbers = #tpu.dot_dimension_numbers<[1], [0], [0], [1], [0, 0, 1, 1], [], []>} : vector<2x32xf32>, vector<32x128xf32>, vector<2x128xf32> -> vector<2x128xf32>
    %65 = arith.addf %63, %64 : vector<2x128xf32>
    %66 = arith.negf %65 : vector<2x128xf32>
    %67 = math.exp %66 : vector<2x128xf32>
    %cst_16 = arith.constant 1.000000e+00 : f32
    %68 = vector.broadcast %cst_16 : f32 to vector<2x128xf32>
    %69 = arith.addf %68, %67 : vector<2x128xf32>
    %70 = arith.divf %68, %69 : vector<2x128xf32>
    %71 = math.tanh %65 : vector<2x128xf32>
    %72 = vector.extract_strided_slice %70 {offsets = [0, 0], sizes = [2, 32], strides = [1, 1]} : vector<2x128xf32> to vector<2x32xf32>
    %73 = vector.extract_strided_slice %70 {offsets = [0, 32], sizes = [2, 32], strides = [1, 1]} : vector<2x128xf32> to vector<2x32xf32>
    %74 = vector.extract_strided_slice %71 {offsets = [0, 64], sizes = [2, 32], strides = [1, 1]} : vector<2x128xf32> to vector<2x32xf32>
    %75 = vector.extract_strided_slice %70 {offsets = [0, 96], sizes = [2, 32], strides = [1, 1]} : vector<2x128xf32> to vector<2x32xf32>
    %76 = arith.mulf %73, %60 : vector<2x32xf32>
    %77 = arith.mulf %72, %74 : vector<2x32xf32>
    %78 = arith.addf %76, %77 : vector<2x32xf32>
    %79 = math.tanh %78 : vector<2x32xf32>
    %80 = arith.mulf %75, %79 : vector<2x32xf32>
    %81 = vector.extract_strided_slice %6 {offsets = [8, 0], sizes = [2, 128], strides = [1, 1]} : vector<16x128xf32> to vector<2x128xf32>
    %cst_17 = arith.constant dense<0.000000e+00> : vector<2x128xf32>
    %82 = tpu.matmul %80, %2, %cst_17 {dimension_numbers = #tpu.dot_dimension_numbers<[1], [0], [0], [1], [0, 0, 1, 1], [], []>} : vector<2x32xf32>, vector<32x128xf32>, vector<2x128xf32> -> vector<2x128xf32>
    %83 = arith.addf %81, %82 : vector<2x128xf32>
    %84 = arith.negf %83 : vector<2x128xf32>
    %85 = math.exp %84 : vector<2x128xf32>
    %cst_18 = arith.constant 1.000000e+00 : f32
    %86 = vector.broadcast %cst_18 : f32 to vector<2x128xf32>
    %87 = arith.addf %86, %85 : vector<2x128xf32>
    %88 = arith.divf %86, %87 : vector<2x128xf32>
    %89 = math.tanh %83 : vector<2x128xf32>
    %90 = vector.extract_strided_slice %88 {offsets = [0, 0], sizes = [2, 32], strides = [1, 1]} : vector<2x128xf32> to vector<2x32xf32>
    %91 = vector.extract_strided_slice %88 {offsets = [0, 32], sizes = [2, 32], strides = [1, 1]} : vector<2x128xf32> to vector<2x32xf32>
    %92 = vector.extract_strided_slice %89 {offsets = [0, 64], sizes = [2, 32], strides = [1, 1]} : vector<2x128xf32> to vector<2x32xf32>
    %93 = vector.extract_strided_slice %88 {offsets = [0, 96], sizes = [2, 32], strides = [1, 1]} : vector<2x128xf32> to vector<2x32xf32>
    %94 = arith.mulf %91, %78 : vector<2x32xf32>
    %95 = arith.mulf %90, %92 : vector<2x32xf32>
    %96 = arith.addf %94, %95 : vector<2x32xf32>
    %97 = math.tanh %96 : vector<2x32xf32>
    %98 = arith.mulf %93, %97 : vector<2x32xf32>
    %99 = vector.extract_strided_slice %6 {offsets = [10, 0], sizes = [2, 128], strides = [1, 1]} : vector<16x128xf32> to vector<2x128xf32>
    %cst_19 = arith.constant dense<0.000000e+00> : vector<2x128xf32>
    %100 = tpu.matmul %98, %2, %cst_19 {dimension_numbers = #tpu.dot_dimension_numbers<[1], [0], [0], [1], [0, 0, 1, 1], [], []>} : vector<2x32xf32>, vector<32x128xf32>, vector<2x128xf32> -> vector<2x128xf32>
    %101 = arith.addf %99, %100 : vector<2x128xf32>
    %102 = arith.negf %101 : vector<2x128xf32>
    %103 = math.exp %102 : vector<2x128xf32>
    %cst_20 = arith.constant 1.000000e+00 : f32
    %104 = vector.broadcast %cst_20 : f32 to vector<2x128xf32>
    %105 = arith.addf %104, %103 : vector<2x128xf32>
    %106 = arith.divf %104, %105 : vector<2x128xf32>
    %107 = math.tanh %101 : vector<2x128xf32>
    %108 = vector.extract_strided_slice %106 {offsets = [0, 0], sizes = [2, 32], strides = [1, 1]} : vector<2x128xf32> to vector<2x32xf32>
    %109 = vector.extract_strided_slice %106 {offsets = [0, 32], sizes = [2, 32], strides = [1, 1]} : vector<2x128xf32> to vector<2x32xf32>
    %110 = vector.extract_strided_slice %107 {offsets = [0, 64], sizes = [2, 32], strides = [1, 1]} : vector<2x128xf32> to vector<2x32xf32>
    %111 = vector.extract_strided_slice %106 {offsets = [0, 96], sizes = [2, 32], strides = [1, 1]} : vector<2x128xf32> to vector<2x32xf32>
    %112 = arith.mulf %109, %96 : vector<2x32xf32>
    %113 = arith.mulf %108, %110 : vector<2x32xf32>
    %114 = arith.addf %112, %113 : vector<2x32xf32>
    %115 = math.tanh %114 : vector<2x32xf32>
    %116 = arith.mulf %111, %115 : vector<2x32xf32>
    %117 = vector.extract_strided_slice %6 {offsets = [12, 0], sizes = [2, 128], strides = [1, 1]} : vector<16x128xf32> to vector<2x128xf32>
    %cst_21 = arith.constant dense<0.000000e+00> : vector<2x128xf32>
    %118 = tpu.matmul %116, %2, %cst_21 {dimension_numbers = #tpu.dot_dimension_numbers<[1], [0], [0], [1], [0, 0, 1, 1], [], []>} : vector<2x32xf32>, vector<32x128xf32>, vector<2x128xf32> -> vector<2x128xf32>
    %119 = arith.addf %117, %118 : vector<2x128xf32>
    %120 = arith.negf %119 : vector<2x128xf32>
    %121 = math.exp %120 : vector<2x128xf32>
    %cst_22 = arith.constant 1.000000e+00 : f32
    %122 = vector.broadcast %cst_22 : f32 to vector<2x128xf32>
    %123 = arith.addf %122, %121 : vector<2x128xf32>
    %124 = arith.divf %122, %123 : vector<2x128xf32>
    %125 = math.tanh %119 : vector<2x128xf32>
    %126 = vector.extract_strided_slice %124 {offsets = [0, 0], sizes = [2, 32], strides = [1, 1]} : vector<2x128xf32> to vector<2x32xf32>
    %127 = vector.extract_strided_slice %124 {offsets = [0, 32], sizes = [2, 32], strides = [1, 1]} : vector<2x128xf32> to vector<2x32xf32>
    %128 = vector.extract_strided_slice %125 {offsets = [0, 64], sizes = [2, 32], strides = [1, 1]} : vector<2x128xf32> to vector<2x32xf32>
    %129 = vector.extract_strided_slice %124 {offsets = [0, 96], sizes = [2, 32], strides = [1, 1]} : vector<2x128xf32> to vector<2x32xf32>
    %130 = arith.mulf %127, %114 : vector<2x32xf32>
    %131 = arith.mulf %126, %128 : vector<2x32xf32>
    %132 = arith.addf %130, %131 : vector<2x32xf32>
    %133 = math.tanh %132 : vector<2x32xf32>
    %134 = arith.mulf %129, %133 : vector<2x32xf32>
    %135 = vector.extract_strided_slice %6 {offsets = [14, 0], sizes = [2, 128], strides = [1, 1]} : vector<16x128xf32> to vector<2x128xf32>
    %cst_23 = arith.constant dense<0.000000e+00> : vector<2x128xf32>
    %136 = tpu.matmul %134, %2, %cst_23 {dimension_numbers = #tpu.dot_dimension_numbers<[1], [0], [0], [1], [0, 0, 1, 1], [], []>} : vector<2x32xf32>, vector<32x128xf32>, vector<2x128xf32> -> vector<2x128xf32>
    %137 = arith.addf %135, %136 : vector<2x128xf32>
    %138 = arith.negf %137 : vector<2x128xf32>
    %139 = math.exp %138 : vector<2x128xf32>
    %cst_24 = arith.constant 1.000000e+00 : f32
    %140 = vector.broadcast %cst_24 : f32 to vector<2x128xf32>
    %141 = arith.addf %140, %139 : vector<2x128xf32>
    %142 = arith.divf %140, %141 : vector<2x128xf32>
    %143 = math.tanh %137 : vector<2x128xf32>
    %144 = vector.extract_strided_slice %142 {offsets = [0, 0], sizes = [2, 32], strides = [1, 1]} : vector<2x128xf32> to vector<2x32xf32>
    %145 = vector.extract_strided_slice %142 {offsets = [0, 32], sizes = [2, 32], strides = [1, 1]} : vector<2x128xf32> to vector<2x32xf32>
    %146 = vector.extract_strided_slice %143 {offsets = [0, 64], sizes = [2, 32], strides = [1, 1]} : vector<2x128xf32> to vector<2x32xf32>
    %147 = vector.extract_strided_slice %142 {offsets = [0, 96], sizes = [2, 32], strides = [1, 1]} : vector<2x128xf32> to vector<2x32xf32>
    %148 = arith.mulf %145, %132 : vector<2x32xf32>
    %149 = arith.mulf %144, %146 : vector<2x32xf32>
    %150 = arith.addf %148, %149 : vector<2x32xf32>
    %151 = math.tanh %150 : vector<2x32xf32>
    %152 = arith.mulf %147, %151 : vector<2x32xf32>
    %153 = tpu.concatenate %26, %44, %62, %80, %98, %116, %134, %152 in 0 : vector<2x32xf32>, vector<2x32xf32>, vector<2x32xf32>, vector<2x32xf32>, vector<2x32xf32>, vector<2x32xf32>, vector<2x32xf32>, vector<2x32xf32> -> vector<16x32xf32>
    %c0_25 = arith.constant 0 : index
    %c0_26 = arith.constant 0 : index
    %154 = vector.load %arg4[%c0_25, %c0_26] : memref<32x128xf32, #tpu.memory_space<vmem>>, vector<32x128xf32>
    %c0_27 = arith.constant 0 : index
    %c0_28 = arith.constant 0 : index
    %155 = vector.load %arg5[%c0_27, %c0_28] : memref<32x128xf32, #tpu.memory_space<vmem>>, vector<32x128xf32>
    %c0_29 = arith.constant 0 : index
    %c0_30 = arith.constant 0 : index
    %156 = vector.load %arg6[%c0_29, %c0_30] : memref<1x128xf32, #tpu.memory_space<vmem>>, vector<1x128xf32>
    %cst_31 = arith.constant dense<0.000000e+00> : vector<16x128xf32>
    %157 = tpu.matmul %153, %154, %cst_31 {dimension_numbers = #tpu.dot_dimension_numbers<[1], [0], [0], [1], [0, 0, 1, 1], [], []>} : vector<16x32xf32>, vector<32x128xf32>, vector<16x128xf32> -> vector<16x128xf32>
    %158 = vector.broadcast %156 : vector<1x128xf32> to vector<16x128xf32>
    %159 = arith.addf %157, %158 : vector<16x128xf32>
    %cst_32 = arith.constant 0.000000e+00 : f32
    %160 = vector.broadcast %cst_32 : f32 to vector<2x32xf32>
    %cst_33 = arith.constant 0.000000e+00 : f32
    %161 = vector.broadcast %cst_33 : f32 to vector<2x32xf32>
    %162 = vector.extract_strided_slice %159 {offsets = [0, 0], sizes = [2, 128], strides = [1, 1]} : vector<16x128xf32> to vector<2x128xf32>
    %cst_34 = arith.constant dense<0.000000e+00> : vector<2x128xf32>
    %163 = tpu.matmul %160, %155, %cst_34 {dimension_numbers = #tpu.dot_dimension_numbers<[1], [0], [0], [1], [0, 0, 1, 1], [], []>} : vector<2x32xf32>, vector<32x128xf32>, vector<2x128xf32> -> vector<2x128xf32>
    %164 = arith.addf %162, %163 : vector<2x128xf32>
    %165 = arith.negf %164 : vector<2x128xf32>
    %166 = math.exp %165 : vector<2x128xf32>
    %cst_35 = arith.constant 1.000000e+00 : f32
    %167 = vector.broadcast %cst_35 : f32 to vector<2x128xf32>
    %168 = arith.addf %167, %166 : vector<2x128xf32>
    %169 = arith.divf %167, %168 : vector<2x128xf32>
    %170 = math.tanh %164 : vector<2x128xf32>
    %171 = vector.extract_strided_slice %169 {offsets = [0, 0], sizes = [2, 32], strides = [1, 1]} : vector<2x128xf32> to vector<2x32xf32>
    %172 = vector.extract_strided_slice %169 {offsets = [0, 32], sizes = [2, 32], strides = [1, 1]} : vector<2x128xf32> to vector<2x32xf32>
    %173 = vector.extract_strided_slice %170 {offsets = [0, 64], sizes = [2, 32], strides = [1, 1]} : vector<2x128xf32> to vector<2x32xf32>
    %174 = vector.extract_strided_slice %169 {offsets = [0, 96], sizes = [2, 32], strides = [1, 1]} : vector<2x128xf32> to vector<2x32xf32>
    %175 = arith.mulf %172, %161 : vector<2x32xf32>
    %176 = arith.mulf %171, %173 : vector<2x32xf32>
    %177 = arith.addf %175, %176 : vector<2x32xf32>
    %178 = math.tanh %177 : vector<2x32xf32>
    %179 = arith.mulf %174, %178 : vector<2x32xf32>
    %180 = vector.extract_strided_slice %159 {offsets = [2, 0], sizes = [2, 128], strides = [1, 1]} : vector<16x128xf32> to vector<2x128xf32>
    %cst_36 = arith.constant dense<0.000000e+00> : vector<2x128xf32>
    %181 = tpu.matmul %179, %155, %cst_36 {dimension_numbers = #tpu.dot_dimension_numbers<[1], [0], [0], [1], [0, 0, 1, 1], [], []>} : vector<2x32xf32>, vector<32x128xf32>, vector<2x128xf32> -> vector<2x128xf32>
    %182 = arith.addf %180, %181 : vector<2x128xf32>
    %183 = arith.negf %182 : vector<2x128xf32>
    %184 = math.exp %183 : vector<2x128xf32>
    %cst_37 = arith.constant 1.000000e+00 : f32
    %185 = vector.broadcast %cst_37 : f32 to vector<2x128xf32>
    %186 = arith.addf %185, %184 : vector<2x128xf32>
    %187 = arith.divf %185, %186 : vector<2x128xf32>
    %188 = math.tanh %182 : vector<2x128xf32>
    %189 = vector.extract_strided_slice %187 {offsets = [0, 0], sizes = [2, 32], strides = [1, 1]} : vector<2x128xf32> to vector<2x32xf32>
    %190 = vector.extract_strided_slice %187 {offsets = [0, 32], sizes = [2, 32], strides = [1, 1]} : vector<2x128xf32> to vector<2x32xf32>
    %191 = vector.extract_strided_slice %188 {offsets = [0, 64], sizes = [2, 32], strides = [1, 1]} : vector<2x128xf32> to vector<2x32xf32>
    %192 = vector.extract_strided_slice %187 {offsets = [0, 96], sizes = [2, 32], strides = [1, 1]} : vector<2x128xf32> to vector<2x32xf32>
    %193 = arith.mulf %190, %177 : vector<2x32xf32>
    %194 = arith.mulf %189, %191 : vector<2x32xf32>
    %195 = arith.addf %193, %194 : vector<2x32xf32>
    %196 = math.tanh %195 : vector<2x32xf32>
    %197 = arith.mulf %192, %196 : vector<2x32xf32>
    %198 = vector.extract_strided_slice %159 {offsets = [4, 0], sizes = [2, 128], strides = [1, 1]} : vector<16x128xf32> to vector<2x128xf32>
    %cst_38 = arith.constant dense<0.000000e+00> : vector<2x128xf32>
    %199 = tpu.matmul %197, %155, %cst_38 {dimension_numbers = #tpu.dot_dimension_numbers<[1], [0], [0], [1], [0, 0, 1, 1], [], []>} : vector<2x32xf32>, vector<32x128xf32>, vector<2x128xf32> -> vector<2x128xf32>
    %200 = arith.addf %198, %199 : vector<2x128xf32>
    %201 = arith.negf %200 : vector<2x128xf32>
    %202 = math.exp %201 : vector<2x128xf32>
    %cst_39 = arith.constant 1.000000e+00 : f32
    %203 = vector.broadcast %cst_39 : f32 to vector<2x128xf32>
    %204 = arith.addf %203, %202 : vector<2x128xf32>
    %205 = arith.divf %203, %204 : vector<2x128xf32>
    %206 = math.tanh %200 : vector<2x128xf32>
    %207 = vector.extract_strided_slice %205 {offsets = [0, 0], sizes = [2, 32], strides = [1, 1]} : vector<2x128xf32> to vector<2x32xf32>
    %208 = vector.extract_strided_slice %205 {offsets = [0, 32], sizes = [2, 32], strides = [1, 1]} : vector<2x128xf32> to vector<2x32xf32>
    %209 = vector.extract_strided_slice %206 {offsets = [0, 64], sizes = [2, 32], strides = [1, 1]} : vector<2x128xf32> to vector<2x32xf32>
    %210 = vector.extract_strided_slice %205 {offsets = [0, 96], sizes = [2, 32], strides = [1, 1]} : vector<2x128xf32> to vector<2x32xf32>
    %211 = arith.mulf %208, %195 : vector<2x32xf32>
    %212 = arith.mulf %207, %209 : vector<2x32xf32>
    %213 = arith.addf %211, %212 : vector<2x32xf32>
    %214 = math.tanh %213 : vector<2x32xf32>
    %215 = arith.mulf %210, %214 : vector<2x32xf32>
    %216 = vector.extract_strided_slice %159 {offsets = [6, 0], sizes = [2, 128], strides = [1, 1]} : vector<16x128xf32> to vector<2x128xf32>
    %cst_40 = arith.constant dense<0.000000e+00> : vector<2x128xf32>
    %217 = tpu.matmul %215, %155, %cst_40 {dimension_numbers = #tpu.dot_dimension_numbers<[1], [0], [0], [1], [0, 0, 1, 1], [], []>} : vector<2x32xf32>, vector<32x128xf32>, vector<2x128xf32> -> vector<2x128xf32>
    %218 = arith.addf %216, %217 : vector<2x128xf32>
    %219 = arith.negf %218 : vector<2x128xf32>
    %220 = math.exp %219 : vector<2x128xf32>
    %cst_41 = arith.constant 1.000000e+00 : f32
    %221 = vector.broadcast %cst_41 : f32 to vector<2x128xf32>
    %222 = arith.addf %221, %220 : vector<2x128xf32>
    %223 = arith.divf %221, %222 : vector<2x128xf32>
    %224 = math.tanh %218 : vector<2x128xf32>
    %225 = vector.extract_strided_slice %223 {offsets = [0, 0], sizes = [2, 32], strides = [1, 1]} : vector<2x128xf32> to vector<2x32xf32>
    %226 = vector.extract_strided_slice %223 {offsets = [0, 32], sizes = [2, 32], strides = [1, 1]} : vector<2x128xf32> to vector<2x32xf32>
    %227 = vector.extract_strided_slice %224 {offsets = [0, 64], sizes = [2, 32], strides = [1, 1]} : vector<2x128xf32> to vector<2x32xf32>
    %228 = vector.extract_strided_slice %223 {offsets = [0, 96], sizes = [2, 32], strides = [1, 1]} : vector<2x128xf32> to vector<2x32xf32>
    %229 = arith.mulf %226, %213 : vector<2x32xf32>
    %230 = arith.mulf %225, %227 : vector<2x32xf32>
    %231 = arith.addf %229, %230 : vector<2x32xf32>
    %232 = math.tanh %231 : vector<2x32xf32>
    %233 = arith.mulf %228, %232 : vector<2x32xf32>
    %234 = vector.extract_strided_slice %159 {offsets = [8, 0], sizes = [2, 128], strides = [1, 1]} : vector<16x128xf32> to vector<2x128xf32>
    %cst_42 = arith.constant dense<0.000000e+00> : vector<2x128xf32>
    %235 = tpu.matmul %233, %155, %cst_42 {dimension_numbers = #tpu.dot_dimension_numbers<[1], [0], [0], [1], [0, 0, 1, 1], [], []>} : vector<2x32xf32>, vector<32x128xf32>, vector<2x128xf32> -> vector<2x128xf32>
    %236 = arith.addf %234, %235 : vector<2x128xf32>
    %237 = arith.negf %236 : vector<2x128xf32>
    %238 = math.exp %237 : vector<2x128xf32>
    %cst_43 = arith.constant 1.000000e+00 : f32
    %239 = vector.broadcast %cst_43 : f32 to vector<2x128xf32>
    %240 = arith.addf %239, %238 : vector<2x128xf32>
    %241 = arith.divf %239, %240 : vector<2x128xf32>
    %242 = math.tanh %236 : vector<2x128xf32>
    %243 = vector.extract_strided_slice %241 {offsets = [0, 0], sizes = [2, 32], strides = [1, 1]} : vector<2x128xf32> to vector<2x32xf32>
    %244 = vector.extract_strided_slice %241 {offsets = [0, 32], sizes = [2, 32], strides = [1, 1]} : vector<2x128xf32> to vector<2x32xf32>
    %245 = vector.extract_strided_slice %242 {offsets = [0, 64], sizes = [2, 32], strides = [1, 1]} : vector<2x128xf32> to vector<2x32xf32>
    %246 = vector.extract_strided_slice %241 {offsets = [0, 96], sizes = [2, 32], strides = [1, 1]} : vector<2x128xf32> to vector<2x32xf32>
    %247 = arith.mulf %244, %231 : vector<2x32xf32>
    %248 = arith.mulf %243, %245 : vector<2x32xf32>
    %249 = arith.addf %247, %248 : vector<2x32xf32>
    %250 = math.tanh %249 : vector<2x32xf32>
    %251 = arith.mulf %246, %250 : vector<2x32xf32>
    %252 = vector.extract_strided_slice %159 {offsets = [10, 0], sizes = [2, 128], strides = [1, 1]} : vector<16x128xf32> to vector<2x128xf32>
    %cst_44 = arith.constant dense<0.000000e+00> : vector<2x128xf32>
    %253 = tpu.matmul %251, %155, %cst_44 {dimension_numbers = #tpu.dot_dimension_numbers<[1], [0], [0], [1], [0, 0, 1, 1], [], []>} : vector<2x32xf32>, vector<32x128xf32>, vector<2x128xf32> -> vector<2x128xf32>
    %254 = arith.addf %252, %253 : vector<2x128xf32>
    %255 = arith.negf %254 : vector<2x128xf32>
    %256 = math.exp %255 : vector<2x128xf32>
    %cst_45 = arith.constant 1.000000e+00 : f32
    %257 = vector.broadcast %cst_45 : f32 to vector<2x128xf32>
    %258 = arith.addf %257, %256 : vector<2x128xf32>
    %259 = arith.divf %257, %258 : vector<2x128xf32>
    %260 = math.tanh %254 : vector<2x128xf32>
    %261 = vector.extract_strided_slice %259 {offsets = [0, 0], sizes = [2, 32], strides = [1, 1]} : vector<2x128xf32> to vector<2x32xf32>
    %262 = vector.extract_strided_slice %259 {offsets = [0, 32], sizes = [2, 32], strides = [1, 1]} : vector<2x128xf32> to vector<2x32xf32>
    %263 = vector.extract_strided_slice %260 {offsets = [0, 64], sizes = [2, 32], strides = [1, 1]} : vector<2x128xf32> to vector<2x32xf32>
    %264 = vector.extract_strided_slice %259 {offsets = [0, 96], sizes = [2, 32], strides = [1, 1]} : vector<2x128xf32> to vector<2x32xf32>
    %265 = arith.mulf %262, %249 : vector<2x32xf32>
    %266 = arith.mulf %261, %263 : vector<2x32xf32>
    %267 = arith.addf %265, %266 : vector<2x32xf32>
    %268 = math.tanh %267 : vector<2x32xf32>
    %269 = arith.mulf %264, %268 : vector<2x32xf32>
    %270 = vector.extract_strided_slice %159 {offsets = [12, 0], sizes = [2, 128], strides = [1, 1]} : vector<16x128xf32> to vector<2x128xf32>
    %cst_46 = arith.constant dense<0.000000e+00> : vector<2x128xf32>
    %271 = tpu.matmul %269, %155, %cst_46 {dimension_numbers = #tpu.dot_dimension_numbers<[1], [0], [0], [1], [0, 0, 1, 1], [], []>} : vector<2x32xf32>, vector<32x128xf32>, vector<2x128xf32> -> vector<2x128xf32>
    %272 = arith.addf %270, %271 : vector<2x128xf32>
    %273 = arith.negf %272 : vector<2x128xf32>
    %274 = math.exp %273 : vector<2x128xf32>
    %cst_47 = arith.constant 1.000000e+00 : f32
    %275 = vector.broadcast %cst_47 : f32 to vector<2x128xf32>
    %276 = arith.addf %275, %274 : vector<2x128xf32>
    %277 = arith.divf %275, %276 : vector<2x128xf32>
    %278 = math.tanh %272 : vector<2x128xf32>
    %279 = vector.extract_strided_slice %277 {offsets = [0, 0], sizes = [2, 32], strides = [1, 1]} : vector<2x128xf32> to vector<2x32xf32>
    %280 = vector.extract_strided_slice %277 {offsets = [0, 32], sizes = [2, 32], strides = [1, 1]} : vector<2x128xf32> to vector<2x32xf32>
    %281 = vector.extract_strided_slice %278 {offsets = [0, 64], sizes = [2, 32], strides = [1, 1]} : vector<2x128xf32> to vector<2x32xf32>
    %282 = vector.extract_strided_slice %277 {offsets = [0, 96], sizes = [2, 32], strides = [1, 1]} : vector<2x128xf32> to vector<2x32xf32>
    %283 = arith.mulf %280, %267 : vector<2x32xf32>
    %284 = arith.mulf %279, %281 : vector<2x32xf32>
    %285 = arith.addf %283, %284 : vector<2x32xf32>
    %286 = math.tanh %285 : vector<2x32xf32>
    %287 = arith.mulf %282, %286 : vector<2x32xf32>
    %288 = vector.extract_strided_slice %159 {offsets = [14, 0], sizes = [2, 128], strides = [1, 1]} : vector<16x128xf32> to vector<2x128xf32>
    %cst_48 = arith.constant dense<0.000000e+00> : vector<2x128xf32>
    %289 = tpu.matmul %287, %155, %cst_48 {dimension_numbers = #tpu.dot_dimension_numbers<[1], [0], [0], [1], [0, 0, 1, 1], [], []>} : vector<2x32xf32>, vector<32x128xf32>, vector<2x128xf32> -> vector<2x128xf32>
    %290 = arith.addf %288, %289 : vector<2x128xf32>
    %291 = arith.negf %290 : vector<2x128xf32>
    %292 = math.exp %291 : vector<2x128xf32>
    %cst_49 = arith.constant 1.000000e+00 : f32
    %293 = vector.broadcast %cst_49 : f32 to vector<2x128xf32>
    %294 = arith.addf %293, %292 : vector<2x128xf32>
    %295 = arith.divf %293, %294 : vector<2x128xf32>
    %296 = math.tanh %290 : vector<2x128xf32>
    %297 = vector.extract_strided_slice %295 {offsets = [0, 0], sizes = [2, 32], strides = [1, 1]} : vector<2x128xf32> to vector<2x32xf32>
    %298 = vector.extract_strided_slice %295 {offsets = [0, 32], sizes = [2, 32], strides = [1, 1]} : vector<2x128xf32> to vector<2x32xf32>
    %299 = vector.extract_strided_slice %296 {offsets = [0, 64], sizes = [2, 32], strides = [1, 1]} : vector<2x128xf32> to vector<2x32xf32>
    %300 = vector.extract_strided_slice %295 {offsets = [0, 96], sizes = [2, 32], strides = [1, 1]} : vector<2x128xf32> to vector<2x32xf32>
    %301 = arith.mulf %298, %285 : vector<2x32xf32>
    %302 = arith.mulf %297, %299 : vector<2x32xf32>
    %303 = arith.addf %301, %302 : vector<2x32xf32>
    %304 = math.tanh %303 : vector<2x32xf32>
    %305 = arith.mulf %300, %304 : vector<2x32xf32>
    %306 = tpu.concatenate %179, %197, %215, %233, %251, %269, %287, %305 in 1 : vector<2x32xf32>, vector<2x32xf32>, vector<2x32xf32>, vector<2x32xf32>, vector<2x32xf32>, vector<2x32xf32>, vector<2x32xf32>, vector<2x32xf32> -> vector<2x256xf32>
    %c0_50 = arith.constant 0 : index
    %c0_51 = arith.constant 0 : index
    %307 = vector.load %arg7[%c0_50, %c0_51] : memref<256x2xf32, #tpu.memory_space<vmem>>, vector<256x2xf32>
    %cst_52 = arith.constant dense<0.000000e+00> : vector<2x2xf32>
    %308 = tpu.matmul %306, %307, %cst_52 {dimension_numbers = #tpu.dot_dimension_numbers<[1], [0], [0], [1], [0, 0, 1, 1], [], []>} : vector<2x256xf32>, vector<256x2xf32>, vector<2x2xf32> -> vector<2x2xf32>
    %c0_53 = arith.constant 0 : index
    %c0_54 = arith.constant 0 : index
    %309 = vector.load %arg8[%c0_53, %c0_54] : memref<1x2xf32, #tpu.memory_space<vmem>>, vector<1x2xf32>
    %310 = vector.broadcast %309 : vector<1x2xf32> to vector<2x2xf32>
    %311 = arith.addf %308, %310 : vector<2x2xf32>
    %c0_55 = arith.constant 0 : index
    %c0_56 = arith.constant 0 : index
    %312 = vector.load %arg9[%c0_55, %c0_56] : memref<2x2xf32, #tpu.memory_space<vmem>>, vector<2x2xf32>
    tpu.vector_store %arg9[%c0_55, %c0_56], %311 {strides = array<i32>} : memref<2x2xf32, #tpu.memory_space<vmem>>, vector<2x2xf32>,
    return
  }
}

</mosaic_0001>

<llo_original>
// kernel: test_model_2_forward.1
$region0: #{test_model_2_forward.1}
  #allocation0 [shape = 'u32[]', space=smem, size = 0x4, offset = 0x4, fixed_abs, tag = 'smem constant byte address 0x4 - core index']
  #allocation1 [shape = 'u32[144,128]{1,0:T(1,128)}', space=vmem, size = 0x12000, scoped, tag = 'internal scratch']
  %s0 = inlined_call_operand.vmem [shape: f32[16,16], index: 0, kind: input, shape index: {}]
  %s1 = inlined_call_operand.vmem [shape: f32[16,128], index: 1, kind: input, shape index: {}]
  %s2 = inlined_call_operand.vmem [shape: f32[32,128], index: 2, kind: input, shape index: {}]
  %s3 = inlined_call_operand.vmem [shape: f32[1,128], index: 3, kind: input, shape index: {}]
  %s4 = inlined_call_operand.vmem [shape: f32[32,128], index: 4, kind: input, shape index: {}]
  %s5 = inlined_call_operand.vmem [shape: f32[32,128], index: 5, kind: input, shape index: {}]
  %s6 = inlined_call_operand.vmem [shape: f32[1,128], index: 6, kind: input, shape index: {}]
  %s7 = inlined_call_operand.vmem [shape: f32[256,2], index: 7, kind: input, shape index: {}]
  %s8 = inlined_call_operand.vmem [shape: f32[1,2], index: 8, kind: input, shape index: {}]
  %s9 = inlined_call_operand.hbm [shape: f32[2,2], index: 9, kind: output, shape index: {}]
  %s10 = sld [smem:[#allocation0]]
  $region46: #{test_model_2_forward.1} parent=0
    _
  %s12 = ssub.s32 1, %s10
  %s13 = scalar_select 0, %s12, %s10
  $region1: #{test_model_2_forward.1} parent=0
    #allocation2 [shape = 'u8[1024]{0}', space=vmem, size = 0x400, scoped, tag = 'output window, operand 0, single buffered']
    #allocation3 [shape = 's32[1]{0}', space=sflag, size = 0x4, scoped, tag = 'scoped memory for test_model_2_forward.1']
    %14 = vsyncpa [#allocation3], 0
    // Predicated region
    $region2: #{test_model_2_forward.1} parent=1 // pred_check
      _
    $region3: #{test_model_2_forward.1} parent=1 // pred_check_branch
      %16 = sbr.rel (0) target = $region5
    $region4: #{test_model_2_forward.1} parent=1 // pred_region
      _
    $region5: #{test_model_2_forward.1} parent=1 // pred_fallthru
      _
    // Predicated region
    $region6: #{test_model_2_forward.1} parent=1 // pred_check
      _
    $region7: #{test_model_2_forward.1} parent=1 // pred_check_branch
      %18 = sbr.rel (0) target = $region9
    $region8: #{test_model_2_forward.1} parent=1 // pred_region
      _
    $region9: #{test_model_2_forward.1} parent=1 // pred_fallthru
      _
    // Predicated region
    $region10: #{test_model_2_forward.1} parent=1 // pred_check
      _
    $region11: #{test_model_2_forward.1} parent=1 // pred_check_branch
      %20 = sbr.rel (0) target = $region13
    $region12: #{test_model_2_forward.1} parent=1 // pred_region
      _
    $region13: #{test_model_2_forward.1} parent=1 // pred_fallthru
      _
    // Predicated region
    $region14: #{test_model_2_forward.1} parent=1 // pred_check
      _
    $region15: #{test_model_2_forward.1} parent=1 // pred_check_branch
      %22 = sbr.rel (0) target = $region17
    $region16: #{test_model_2_forward.1} parent=1 // pred_region
      _
    $region17: #{test_model_2_forward.1} parent=1 // pred_fallthru
      _
    // Predicated region
    $region18: #{test_model_2_forward.1} parent=1 // pred_check
      _
    $region19: #{test_model_2_forward.1} parent=1 // pred_check_branch
      %24 = sbr.rel (0) target = $region21
    $region20: #{test_model_2_forward.1} parent=1 // pred_region
      _
    $region21: #{test_model_2_forward.1} parent=1 // pred_fallthru
      _
    // Predicated region
    $region22: #{test_model_2_forward.1} parent=1 // pred_check
      _
    $region23: #{test_model_2_forward.1} parent=1 // pred_check_branch
      %26 = sbr.rel (0) target = $region25
    $region24: #{test_model_2_forward.1} parent=1 // pred_region
      _
    $region25: #{test_model_2_forward.1} parent=1 // pred_fallthru
      _
    // Predicated region
    $region26: #{test_model_2_forward.1} parent=1 // pred_check
      _
    $region27: #{test_model_2_forward.1} parent=1 // pred_check_branch
      %28 = sbr.rel (0) target = $region29
    $region28: #{test_model_2_forward.1} parent=1 // pred_region
      _
    $region29: #{test_model_2_forward.1} parent=1 // pred_fallthru
      _
    // Predicated region
    $region30: #{test_model_2_forward.1} parent=1 // pred_check
      _
    $region31: #{test_model_2_forward.1} parent=1 // pred_check_branch
      %30 = sbr.rel (0) target = $region33
    $region32: #{test_model_2_forward.1} parent=1 // pred_region
      _
    $region33: #{test_model_2_forward.1} parent=1 // pred_fallthru
      _
    // Predicated region
    $region34: #{test_model_2_forward.1} parent=1 // pred_check
      _
    $region35: #{test_model_2_forward.1} parent=1 // pred_check_branch
      %32 = sbr.rel (0) target = $region37
    $region36: #{test_model_2_forward.1} parent=1 // pred_region
      _
    $region37: #{test_model_2_forward.1} parent=1 // pred_fallthru
      _
    %v33 = vld [vmem:[%s0] sm:$0xff]
    %v34 = vld [vmem:[%s0 + $0x8] sm:$0xff]
    %v35 = vld [vmem:[%s1] sm:$0xff]
    %v36 = vld [vmem:[%s1 + $0x8] sm:$0xff]
    %v37 = vld [vmem:[%s2] sm:$0xff]
    %v38 = vld [vmem:[%s2 + $0x8] sm:$0xff]
    %v39 = vld [vmem:[%s2 + $0x10] sm:$0xff]
    %v40 = vld [vmem:[%s2 + $0x18] sm:$0xff]
    %v41 = vld [vmem:[%s3] sm:$0x1]
    %v43 = vlaneseq
    %v44 = vshrl.u32 %v43, 7
    %v45 = vsub.s32 0, %v44
    %v46 = vrot.slane %v41, %v45
    %vm48 = vcmask 130048
    %v50 = vsel %vm48, %v33, 0
    %v53 = vsel %vm48, %v34, 0
    %55 = vmatprep.subr.mxu0 0.0
    %56 = vmatpush1.msra.mxu0 %v35
    %57 = vmatprep.subr.mxu0 0.0
    %58 = vmatpush1.msra.mxu0 %v36
    %59 = vmatprep.subr.mxu0 0.0
    %60 = vmatpush1.msra.mxu0 0.0
    %61 = vmatprep.subr.mxu0 0.0
    %62 = vmatpush1.msra.mxu0 0.0
    %63 = vmatprep.subr.mxu0 0.0
    %64 = vmatpush1.msra.mxu0 0.0
    %65 = vmatprep.subr.mxu0 0.0
    %66 = vmatpush1.msra.mxu0 0.0
    %67 = vmatprep.subr.mxu0 0.0
    %68 = vmatpush1.msra.mxu0 0.0
    %69 = vmatprep.subr.mxu0 0.0
    %70 = vmatpush1.msra.mxu0 0.0
    %71 = vmatprep.subr.mxu0 0.0
    %72 = vmatpush1.msra.mxu0 0.0
    %73 = vmatprep.subr.mxu0 0.0
    %74 = vmatpush1.msra.mxu0 0.0
    %75 = vmatprep.subr.mxu0 0.0
    %76 = vmatpush1.msra.mxu0 0.0
    %77 = vmatprep.subr.mxu0 0.0
    %78 = vmatpush1.msra.mxu0 0.0
    %79 = vmatprep.subr.mxu0 0.0
    %80 = vmatpush1.msra.mxu0 0.0
    %81 = vmatprep.subr.mxu0 0.0
    %82 = vmatpush1.msra.mxu0 0.0
    %83 = vmatprep.subr.mxu0 0.0
    %84 = vmatpush1.msra.mxu0 0.0
    %85 = vmatprep.subr.mxu0 0.0
    %86 = vmatpush1.msra.mxu0 0.0
    %87 = vmatprep.subr.mxu0 0.0
    %88 = vmatpush1.msra.mxu0 0.0
    %89 = vmatprep.subr.mxu0 0.0
    %90 = vmatpush1.msra.mxu0 0.0
    %91 = vmatprep.subr.mxu0 0.0
    %92 = vmatpush1.msra.mxu0 0.0
    %93 = vmatprep.subr.mxu0 0.0
    %94 = vmatpush1.msra.mxu0 0.0
    %95 = vmatprep.subr.mxu0 0.0
    %96 = vmatpush1.msra.mxu0 0.0
    %97 = vmatprep.subr.mxu0 0.0
    %98 = vmatpush1.msra.mxu0 0.0
    %99 = vmatprep.subr.mxu0 0.0
    %100 = vmatpush1.msra.mxu0 0.0
    %101 = vmatprep.subr.mxu0 0.0
    %102 = vmatpush1.msra.mxu0 0.0
    %103 = vmatprep.subr.mxu0 0.0
    %104 = vmatpush1.msra.mxu0 0.0
    %105 = vmatprep.subr.mxu0 0.0
    %106 = vmatpush1.msra.mxu0 0.0
    %107 = vmatprep.subr.mxu0 0.0
    %108 = vmatpush1.msra.mxu0 0.0
    %109 = vmatprep.subr.mxu0 0.0
    %110 = vmatpush1.msra.mxu0 0.0
    %111 = vmatprep.subr.mxu0 0.0
    %112 = vmatpush1.msra.mxu0 0.0
    %113 = vmatprep.subr.mxu0 0.0
    %114 = vmatpush1.msra.mxu0 0.0
    %115 = vmatprep.subr.mxu0 0.0
    %116 = vmatpush1.msra.mxu0 0.0
    %117 = vmatprep.subr.mxu0 0.0
    %118 = vmatpush1.msra.mxu0 0.0
    %119 = vmatprep.mubr.f32.mxu0 0.0
    %120 = vmatmul.mubr.f32.gmra.mrb[0].mxu0 %v50
    %v121 = vpop.f32.mrb[0].mxu0
    %v122 = vadd.f32 %v46, %v121
    %v123 = vpop.f32.mrb[0].mxu0
    %124 = vmatprep.mubr.f32.mxu0 0.0
    %125 = vmatmul.mubr.f32.gmra.mrb[0].mxu0 %v53
    %v126 = vpop.f32.mrb[0].mxu0
    %v127 = vadd.f32 %v46, %v126
    %v128 = vpop.f32.mrb[0].mxu0
    %129 = vdwg.mxu0
    %vm130 = vcmask 261120
    %v132 = vsel %vm130, 0.0, 0
    %134 = vmatprep.subr.mxu0 0.0
    %135 = vmatpush1.msra.mxu0 %v37
    %136 = vmatprep.subr.mxu0 0.0
    %137 = vmatpush1.msra.mxu0 %v38
    %138 = vmatprep.subr.mxu0 0.0
    %139 = vmatpush1.msra.mxu0 %v39
    %140 = vmatprep.subr.mxu0 0.0
    %141 = vmatpush1.msra.mxu0 %v40
    %142 = vmatprep.subr.mxu0 0.0
    %143 = vmatpush1.msra.mxu0 0.0
    %144 = vmatprep.subr.mxu0 0.0
    %145 = vmatpush1.msra.mxu0 0.0
    %146 = vmatprep.subr.mxu0 0.0
    %147 = vmatpush1.msra.mxu0 0.0
    %148 = vmatprep.subr.mxu0 0.0
    %149 = vmatpush1.msra.mxu0 0.0
    %150 = vmatprep.subr.mxu0 0.0
    %151 = vmatpush1.msra.mxu0 0.0
    %152 = vmatprep.subr.mxu0 0.0
    %153 = vmatpush1.msra.mxu0 0.0
    %154 = vmatprep.subr.mxu0 0.0
    %155 = vmatpush1.msra.mxu0 0.0
    %156 = vmatprep.subr.mxu0 0.0
    %157 = vmatpush1.msra.mxu0 0.0
    %158 = vmatprep.subr.mxu0 0.0
    %159 = vmatpush1.msra.mxu0 0.0
    %160 = vmatprep.subr.mxu0 0.0
    %161 = vmatpush1.msra.mxu0 0.0
    %162 = vmatprep.subr.mxu0 0.0
    %163 = vmatpush1.msra.mxu0 0.0
    %164 = vmatprep.subr.mxu0 0.0
    %165 = vmatpush1.msra.mxu0 0.0
    %166 = vmatprep.subr.mxu0 0.0
    %167 = vmatpush1.msra.mxu0 0.0
    %168 = vmatprep.subr.mxu0 0.0
    %169 = vmatpush1.msra.mxu0 0.0
    %170 = vmatprep.subr.mxu0 0.0
    %171 = vmatpush1.msra.mxu0 0.0
    %172 = vmatprep.subr.mxu0 0.0
    %173 = vmatpush1.msra.mxu0 0.0
    %174 = vmatprep.subr.mxu0 0.0
    %175 = vmatpush1.msra.mxu0 0.0
    %176 = vmatprep.subr.mxu0 0.0
    %177 = vmatpush1.msra.mxu0 0.0
    %178 = vmatprep.subr.mxu0 0.0
    %179 = vmatpush1.msra.mxu0 0.0
    %180 = vmatprep.subr.mxu0 0.0
    %181 = vmatpush1.msra.mxu0 0.0
    %182 = vmatprep.subr.mxu0 0.0
    %183 = vmatpush1.msra.mxu0 0.0
    %184 = vmatprep.subr.mxu0 0.0
    %185 = vmatpush1.msra.mxu0 0.0
    %186 = vmatprep.subr.mxu0 0.0
    %187 = vmatpush1.msra.mxu0 0.0
    %188 = vmatprep.subr.mxu0 0.0
    %189 = vmatpush1.msra.mxu0 0.0
    %190 = vmatprep.subr.mxu0 0.0
    %191 = vmatpush1.msra.mxu0 0.0
    %192 = vmatprep.subr.mxu0 0.0
    %193 = vmatpush1.msra.mxu0 0.0
    %194 = vmatprep.subr.mxu0 0.0
    %195 = vmatpush1.msra.mxu0 0.0
    %196 = vmatprep.subr.mxu0 0.0
    %197 = vmatpush1.msra.mxu0 0.0
    %198 = vmatprep.mubr.f32.mxu0 0.0
    %199 = vmatmul.mubr.f32.gmra.mrb[0].mxu0 %v132
    %v200 = vpop.f32.mrb[0].mxu0
    %v201 = vadd.f32 0.0, %v200
    %v202 = vpop.f32.mrb[0].mxu0
    %203 = vdwg.mxu0
    %v204 = vadd.f32 %v122, %v201
    %v205 = vxor.u32 %v204, 2147483648
    %v206 = vmul.f32 %v205, 1.442695
    %v207 = vpow.pop %v206
    %v208 = vadd.f32 %v207, 1.0
    %v209 = vrcp.pop %v208
    %v210 = vmul.f32 1.0, %v209
    %v211 = vtanh.pop %v204
    %v212 = vmul.f32 %v210, 0.0
    %214 = vrot.lane.b32.xlu0 %v211, 64
    %v215 = vpop.permute.xlu0 %214
    %v217 = vmul.f32 %v210, %v215
    %219 = vrot.lane.b32.xlu0 %v217, 32
    %v220 = vpop.permute.xlu0 %219
    %v222 = vadd.f32 %v212, %v220
    %v223 = vtanh.pop %v222
    %225 = vrot.lane.b32.xlu0 %v223, 64
    %v226 = vpop.permute.xlu0 %225
    %v228 = vmul.f32 %v210, %v226
    %230 = vrot.lane.b32.xlu0 %v228, 32
    %v231 = vpop.permute.xlu0 %230
    %v232 = vsel %vm130, %v231, 0
    %234 = vmatprep.subr.mxu0 0.0
    %235 = vmatpush1.msra.mxu0 %v37
    %236 = vmatprep.subr.mxu0 0.0
    %237 = vmatpush1.msra.mxu0 %v38
    %238 = vmatprep.subr.mxu0 0.0
    %239 = vmatpush1.msra.mxu0 %v39
    %240 = vmatprep.subr.mxu0 0.0
    %241 = vmatpush1.msra.mxu0 %v40
    %242 = vmatprep.subr.mxu0 0.0
    %243 = vmatpush1.msra.mxu0 0.0
    %244 = vmatprep.subr.mxu0 0.0
    %245 = vmatpush1.msra.mxu0 0.0
    %246 = vmatprep.subr.mxu0 0.0
    %247 = vmatpush1.msra.mxu0 0.0
    %248 = vmatprep.subr.mxu0 0.0
    %249 = vmatpush1.msra.mxu0 0.0
    %250 = vmatprep.subr.mxu0 0.0
    %251 = vmatpush1.msra.mxu0 0.0
    %252 = vmatprep.subr.mxu0 0.0
    %253 = vmatpush1.msra.mxu0 0.0
    %254 = vmatprep.subr.mxu0 0.0
    %255 = vmatpush1.msra.mxu0 0.0
    %256 = vmatprep.subr.mxu0 0.0
    %257 = vmatpush1.msra.mxu0 0.0
    %258 = vmatprep.subr.mxu0 0.0
    %259 = vmatpush1.msra.mxu0 0.0
    %260 = vmatprep.subr.mxu0 0.0
    %261 = vmatpush1.msra.mxu0 0.0
    %262 = vmatprep.subr.mxu0 0.0
    %263 = vmatpush1.msra.mxu0 0.0
    %264 = vmatprep.subr.mxu0 0.0
    %265 = vmatpush1.msra.mxu0 0.0
    %266 = vmatprep.subr.mxu0 0.0
    %267 = vmatpush1.msra.mxu0 0.0
    %268 = vmatprep.subr.mxu0 0.0
    %269 = vmatpush1.msra.mxu0 0.0
    %270 = vmatprep.subr.mxu0 0.0
    %271 = vmatpush1.msra.mxu0 0.0
    %272 = vmatprep.subr.mxu0 0.0
    %273 = vmatpush1.msra.mxu0 0.0
    %274 = vmatprep.subr.mxu0 0.0
    %275 = vmatpush1.msra.mxu0 0.0
    %276 = vmatprep.subr.mxu0 0.0
    %277 = vmatpush1.msra.mxu0 0.0
    %278 = vmatprep.subr.mxu0 0.0
    %279 = vmatpush1.msra.mxu0 0.0
    %280 = vmatprep.subr.mxu0 0.0
    %281 = vmatpush1.msra.mxu0 0.0
    %282 = vmatprep.subr.mxu0 0.0
    %283 = vmatpush1.msra.mxu0 0.0
    %284 = vmatprep.subr.mxu0 0.0
    %285 = vmatpush1.msra.mxu0 0.0
    %286 = vmatprep.subr.mxu0 0.0
    %287 = vmatpush1.msra.mxu0 0.0
    %288 = vmatprep.subr.mxu0 0.0
    %289 = vmatpush1.msra.mxu0 0.0
    %290 = vmatprep.subr.mxu0 0.0
    %291 = vmatpush1.msra.mxu0 0.0
    %292 = vmatprep.subr.mxu0 0.0
    %293 = vmatpush1.msra.mxu0 0.0
    %294 = vmatprep.subr.mxu0 0.0
    %295 = vmatpush1.msra.mxu0 0.0
    %296 = vmatprep.subr.mxu0 0.0
    %297 = vmatpush1.msra.mxu0 0.0
    %298 = vmatprep.mubr.f32.mxu0 0.0
    %299 = vmatmul.mubr.f32.gmra.mrb[0].mxu0 %v232
    %v300 = vpop.f32.mrb[0].mxu0
    %v301 = vadd.f32 0.0, %v300
    %v302 = vpop.f32.mrb[0].mxu0
    %303 = vdwg.mxu0
    %v305 = vrot.slane %v301, 6
    %v307 = vadd.f32 %v122, %v305
    %v308 = vxor.u32 %v307, 2147483648
    %v309 = vmul.f32 %v308, 1.442695
    %v310 = vpow.pop %v309
    %v311 = vadd.f32 %v310, 1.0
    %v312 = vrcp.pop %v311
    %v313 = vmul.f32 1.0, %v312
    %v314 = vtanh.pop %v307
    %v316 = vrot.slane %v222, 6
    %v318 = vmul.f32 %v313, %v316
    %320 = vrot.lane.b32.xlu0 %v314, 64
    %v321 = vpop.permute.xlu0 %320
    %v323 = vmul.f32 %v313, %v321
    %325 = vrot.lane.b32.xlu0 %v323, 32
    %v326 = vpop.permute.xlu0 %325
    %v328 = vadd.f32 %v318, %v326
    %v329 = vtanh.pop %v328
    %331 = vrot.lane.b32.xlu0 %v329, 64
    %v332 = vpop.permute.xlu0 %331
    %v334 = vmul.f32 %v313, %v332
    %v336 = vrot.slane %v334, 2
    %337 = vrot.lane.b32.xlu0 %v336, 32
    %v338 = vpop.permute.xlu0 %337
    %v339 = vsel %vm130, %v338, 0
    %341 = vmatprep.subr.mxu0 0.0
    %342 = vmatpush1.msra.mxu0 %v37
    %343 = vmatprep.subr.mxu0 0.0
    %344 = vmatpush1.msra.mxu0 %v38
    %345 = vmatprep.subr.mxu0 0.0
    %346 = vmatpush1.msra.mxu0 %v39
    %347 = vmatprep.subr.mxu0 0.0
    %348 = vmatpush1.msra.mxu0 %v40
    %349 = vmatprep.subr.mxu0 0.0
    %350 = vmatpush1.msra.mxu0 0.0
    %351 = vmatprep.subr.mxu0 0.0
    %352 = vmatpush1.msra.mxu0 0.0
    %353 = vmatprep.subr.mxu0 0.0
    %354 = vmatpush1.msra.mxu0 0.0
    %355 = vmatprep.subr.mxu0 0.0
    %356 = vmatpush1.msra.mxu0 0.0
    %357 = vmatprep.subr.mxu0 0.0
    %358 = vmatpush1.msra.mxu0 0.0
    %359 = vmatprep.subr.mxu0 0.0
    %360 = vmatpush1.msra.mxu0 0.0
    %361 = vmatprep.subr.mxu0 0.0
    %362 = vmatpush1.msra.mxu0 0.0
    %363 = vmatprep.subr.mxu0 0.0
    %364 = vmatpush1.msra.mxu0 0.0
    %365 = vmatprep.subr.mxu0 0.0
    %366 = vmatpush1.msra.mxu0 0.0
    %367 = vmatprep.subr.mxu0 0.0
    %368 = vmatpush1.msra.mxu0 0.0
    %369 = vmatprep.subr.mxu0 0.0
    %370 = vmatpush1.msra.mxu0 0.0
    %371 = vmatprep.subr.mxu0 0.0
    %372 = vmatpush1.msra.mxu0 0.0
    %373 = vmatprep.subr.mxu0 0.0
    %374 = vmatpush1.msra.mxu0 0.0
    %375 = vmatprep.subr.mxu0 0.0
    %376 = vmatpush1.msra.mxu0 0.0
    %377 = vmatprep.subr.mxu0 0.0
    %378 = vmatpush1.msra.mxu0 0.0
    %379 = vmatprep.subr.mxu0 0.0
    %380 = vmatpush1.msra.mxu0 0.0
    %381 = vmatprep.subr.mxu0 0.0
    %382 = vmatpush1.msra.mxu0 0.0
    %383 = vmatprep.subr.mxu0 0.0
    %384 = vmatpush1.msra.mxu0 0.0
    %385 = vmatprep.subr.mxu0 0.0
    %386 = vmatpush1.msra.mxu0 0.0
    %387 = vmatprep.subr.mxu0 0.0
    %388 = vmatpush1.msra.mxu0 0.0
    %389 = vmatprep.subr.mxu0 0.0
    %390 = vmatpush1.msra.mxu0 0.0
    %391 = vmatprep.subr.mxu0 0.0
    %392 = vmatpush1.msra.mxu0 0.0
    %393 = vmatprep.subr.mxu0 0.0
    %394 = vmatpush1.msra.mxu0 0.0
    %395 = vmatprep.subr.mxu0 0.0
    %396 = vmatpush1.msra.mxu0 0.0
    %397 = vmatprep.subr.mxu0 0.0
    %398 = vmatpush1.msra.mxu0 0.0
    %399 = vmatprep.subr.mxu0 0.0
    %400 = vmatpush1.msra.mxu0 0.0
    %401 = vmatprep.subr.mxu0 0.0
    %402 = vmatpush1.msra.mxu0 0.0
    %403 = vmatprep.subr.mxu0 0.0
    %404 = vmatpush1.msra.mxu0 0.0
    %405 = vmatprep.mubr.f32.mxu0 0.0
    %406 = vmatmul.mubr.f32.gmra.mrb[0].mxu0 %v339
    %v407 = vpop.f32.mrb[0].mxu0
    %v408 = vadd.f32 0.0, %v407
    %v409 = vpop.f32.mrb[0].mxu0
    %410 = vdwg.mxu0
    %v412 = vrot.slane %v408, 4
    %v414 = vadd.f32 %v122, %v412
    %v415 = vxor.u32 %v414, 2147483648
    %v416 = vmul.f32 %v415, 1.442695
    %v417 = vpow.pop %v416
    %v418 = vadd.f32 %v417, 1.0
    %v419 = vrcp.pop %v418
    %v420 = vmul.f32 1.0, %v419
    %v421 = vtanh.pop %v414
    %v423 = vrot.slane %v328, 6
    %v425 = vmul.f32 %v420, %v423
    %427 = vrot.lane.b32.xlu0 %v421, 64
    %v428 = vpop.permute.xlu0 %427
    %v430 = vmul.f32 %v420, %v428
    %432 = vrot.lane.b32.xlu0 %v430, 32
    %v433 = vpop.permute.xlu0 %432
    %v435 = vadd.f32 %v425, %v433
    %v436 = vtanh.pop %v435
    %438 = vrot.lane.b32.xlu0 %v436, 64
    %v439 = vpop.permute.xlu0 %438
    %v441 = vmul.f32 %v420, %v439
    %v443 = vrot.slane %v441, 4
    %444 = vrot.lane.b32.xlu0 %v443, 32
    %v445 = vpop.permute.xlu0 %444
    %v446 = vsel %vm130, %v445, 0
    %448 = vmatprep.subr.mxu0 0.0
    %449 = vmatpush1.msra.mxu0 %v37
    %450 = vmatprep.subr.mxu0 0.0
    %451 = vmatpush1.msra.mxu0 %v38
    %452 = vmatprep.subr.mxu0 0.0
    %453 = vmatpush1.msra.mxu0 %v39
    %454 = vmatprep.subr.mxu0 0.0
    %455 = vmatpush1.msra.mxu0 %v40
    %456 = vmatprep.subr.mxu0 0.0
    %457 = vmatpush1.msra.mxu0 0.0
    %458 = vmatprep.subr.mxu0 0.0
    %459 = vmatpush1.msra.mxu0 0.0
    %460 = vmatprep.subr.mxu0 0.0
    %461 = vmatpush1.msra.mxu0 0.0
    %462 = vmatprep.subr.mxu0 0.0
    %463 = vmatpush1.msra.mxu0 0.0
    %464 = vmatprep.subr.mxu0 0.0
    %465 = vmatpush1.msra.mxu0 0.0
    %466 = vmatprep.subr.mxu0 0.0
    %467 = vmatpush1.msra.mxu0 0.0
    %468 = vmatprep.subr.mxu0 0.0
    %469 = vmatpush1.msra.mxu0 0.0
    %470 = vmatprep.subr.mxu0 0.0
    %471 = vmatpush1.msra.mxu0 0.0
    %472 = vmatprep.subr.mxu0 0.0
    %473 = vmatpush1.msra.mxu0 0.0
    %474 = vmatprep.subr.mxu0 0.0
    %475 = vmatpush1.msra.mxu0 0.0
    %476 = vmatprep.subr.mxu0 0.0
    %477 = vmatpush1.msra.mxu0 0.0
    %478 = vmatprep.subr.mxu0 0.0
    %479 = vmatpush1.msra.mxu0 0.0
    %480 = vmatprep.subr.mxu0 0.0
    %481 = vmatpush1.msra.mxu0 0.0
    %482 = vmatprep.subr.mxu0 0.0
    %483 = vmatpush1.msra.mxu0 0.0
    %484 = vmatprep.subr.mxu0 0.0
    %485 = vmatpush1.msra.mxu0 0.0
    %486 = vmatprep.subr.mxu0 0.0
    %487 = vmatpush1.msra.mxu0 0.0
    %488 = vmatprep.subr.mxu0 0.0
    %489 = vmatpush1.msra.mxu0 0.0
    %490 = vmatprep.subr.mxu0 0.0
    %491 = vmatpush1.msra.mxu0 0.0
    %492 = vmatprep.subr.mxu0 0.0
    %493 = vmatpush1.msra.mxu0 0.0
    %494 = vmatprep.subr.mxu0 0.0
    %495 = vmatpush1.msra.mxu0 0.0
    %496 = vmatprep.subr.mxu0 0.0
    %497 = vmatpush1.msra.mxu0 0.0
    %498 = vmatprep.subr.mxu0 0.0
    %499 = vmatpush1.msra.mxu0 0.0
    %500 = vmatprep.subr.mxu0 0.0
    %501 = vmatpush1.msra.mxu0 0.0
    %502 = vmatprep.subr.mxu0 0.0
    %503 = vmatpush1.msra.mxu0 0.0
    %504 = vmatprep.subr.mxu0 0.0
    %505 = vmatpush1.msra.mxu0 0.0
    %506 = vmatprep.subr.mxu0 0.0
    %507 = vmatpush1.msra.mxu0 0.0
    %508 = vmatprep.subr.mxu0 0.0
    %509 = vmatpush1.msra.mxu0 0.0
    %510 = vmatprep.subr.mxu0 0.0
    %511 = vmatpush1.msra.mxu0 0.0
    %512 = vmatprep.mubr.f32.mxu0 0.0
    %513 = vmatmul.mubr.f32.gmra.mrb[0].mxu0 %v446
    %v514 = vpop.f32.mrb[0].mxu0
    %v515 = vadd.f32 0.0, %v514
    %v516 = vpop.f32.mrb[0].mxu0
    %517 = vdwg.mxu0
    %v519 = vrot.slane %v515, 2
    %v521 = vadd.f32 %v122, %v519
    %v522 = vxor.u32 %v521, 2147483648
    %v523 = vmul.f32 %v522, 1.442695
    %v524 = vpow.pop %v523
    %v525 = vadd.f32 %v524, 1.0
    %v526 = vrcp.pop %v525
    %v527 = vmul.f32 1.0, %v526
    %v528 = vtanh.pop %v521
    %v530 = vrot.slane %v435, 6
    %v532 = vmul.f32 %v527, %v530
    %534 = vrot.lane.b32.xlu0 %v528, 64
    %v535 = vpop.permute.xlu0 %534
    %v537 = vmul.f32 %v527, %v535
    %539 = vrot.lane.b32.xlu0 %v537, 32
    %v540 = vpop.permute.xlu0 %539
    %v542 = vadd.f32 %v532, %v540
    %v543 = vtanh.pop %v542
    %545 = vrot.lane.b32.xlu0 %v543, 64
    %v546 = vpop.permute.xlu0 %545
    %v548 = vmul.f32 %v527, %v546
    %v550 = vrot.slane %v548, 6
    %551 = vrot.lane.b32.xlu0 %v550, 32
    %v552 = vpop.permute.xlu0 %551
    %v553 = vsel %vm130, %v552, 0
    %555 = vmatprep.subr.mxu0 0.0
    %556 = vmatpush1.msra.mxu0 %v37
    %557 = vmatprep.subr.mxu0 0.0
    %558 = vmatpush1.msra.mxu0 %v38
    %559 = vmatprep.subr.mxu0 0.0
    %560 = vmatpush1.msra.mxu0 %v39
    %561 = vmatprep.subr.mxu0 0.0
    %562 = vmatpush1.msra.mxu0 %v40
    %563 = vmatprep.subr.mxu0 0.0
    %564 = vmatpush1.msra.mxu0 0.0
    %565 = vmatprep.subr.mxu0 0.0
    %566 = vmatpush1.msra.mxu0 0.0
    %567 = vmatprep.subr.mxu0 0.0
    %568 = vmatpush1.msra.mxu0 0.0
    %569 = vmatprep.subr.mxu0 0.0
    %570 = vmatpush1.msra.mxu0 0.0
    %571 = vmatprep.subr.mxu0 0.0
    %572 = vmatpush1.msra.mxu0 0.0
    %573 = vmatprep.subr.mxu0 0.0
    %574 = vmatpush1.msra.mxu0 0.0
    %575 = vmatprep.subr.mxu0 0.0
    %576 = vmatpush1.msra.mxu0 0.0
    %577 = vmatprep.subr.mxu0 0.0
    %578 = vmatpush1.msra.mxu0 0.0
    %579 = vmatprep.subr.mxu0 0.0
    %580 = vmatpush1.msra.mxu0 0.0
    %581 = vmatprep.subr.mxu0 0.0
    %582 = vmatpush1.msra.mxu0 0.0
    %583 = vmatprep.subr.mxu0 0.0
    %584 = vmatpush1.msra.mxu0 0.0
    %585 = vmatprep.subr.mxu0 0.0
    %586 = vmatpush1.msra.mxu0 0.0
    %587 = vmatprep.subr.mxu0 0.0
    %588 = vmatpush1.msra.mxu0 0.0
    %589 = vmatprep.subr.mxu0 0.0
    %590 = vmatpush1.msra.mxu0 0.0
    %591 = vmatprep.subr.mxu0 0.0
    %592 = vmatpush1.msra.mxu0 0.0
    %593 = vmatprep.subr.mxu0 0.0
    %594 = vmatpush1.msra.mxu0 0.0
    %595 = vmatprep.subr.mxu0 0.0
    %596 = vmatpush1.msra.mxu0 0.0
    %597 = vmatprep.subr.mxu0 0.0
    %598 = vmatpush1.msra.mxu0 0.0
    %599 = vmatprep.subr.mxu0 0.0
    %600 = vmatpush1.msra.mxu0 0.0
    %601 = vmatprep.subr.mxu0 0.0
    %602 = vmatpush1.msra.mxu0 0.0
    %603 = vmatprep.subr.mxu0 0.0
    %604 = vmatpush1.msra.mxu0 0.0
    %605 = vmatprep.subr.mxu0 0.0
    %606 = vmatpush1.msra.mxu0 0.0
    %607 = vmatprep.subr.mxu0 0.0
    %608 = vmatpush1.msra.mxu0 0.0
    %609 = vmatprep.subr.mxu0 0.0
    %610 = vmatpush1.msra.mxu0 0.0
    %611 = vmatprep.subr.mxu0 0.0
    %612 = vmatpush1.msra.mxu0 0.0
    %613 = vmatprep.subr.mxu0 0.0
    %614 = vmatpush1.msra.mxu0 0.0
    %615 = vmatprep.subr.mxu0 0.0
    %616 = vmatpush1.msra.mxu0 0.0
    %617 = vmatprep.subr.mxu0 0.0
    %618 = vmatpush1.msra.mxu0 0.0
    %619 = vmatprep.mubr.f32.mxu0 0.0
    %620 = vmatmul.mubr.f32.gmra.mrb[0].mxu0 %v553
    %v621 = vpop.f32.mrb[0].mxu0
    %v622 = vadd.f32 0.0, %v621
    %v623 = vpop.f32.mrb[0].mxu0
    %624 = vdwg.mxu0
    %v625 = vadd.f32 %v127, %v622
    %v626 = vxor.u32 %v625, 2147483648
    %v627 = vmul.f32 %v626, 1.442695
    %v628 = vpow.pop %v627
    %v629 = vadd.f32 %v628, 1.0
    %v630 = vrcp.pop %v629
    %v631 = vmul.f32 1.0, %v630
    %v632 = vtanh.pop %v625
    %v634 = vrot.slane %v542, 6
    %v636 = vmul.f32 %v631, %v634
    %638 = vrot.lane.b32.xlu0 %v632, 64
    %v639 = vpop.permute.xlu0 %638
    %v641 = vmul.f32 %v631, %v639
    %643 = vrot.lane.b32.xlu0 %v641, 32
    %v644 = vpop.permute.xlu0 %643
    %v646 = vadd.f32 %v636, %v644
    %v647 = vtanh.pop %v646
    %649 = vrot.lane.b32.xlu0 %v647, 64
    %v650 = vpop.permute.xlu0 %649
    %v652 = vmul.f32 %v631, %v650
    %654 = vrot.lane.b32.xlu0 %v652, 32
    %v655 = vpop.permute.xlu0 %654
    %v656 = vsel %vm130, %v655, 0
    %658 = vmatprep.subr.mxu0 0.0
    %659 = vmatpush1.msra.mxu0 %v37
    %660 = vmatprep.subr.mxu0 0.0
    %661 = vmatpush1.msra.mxu0 %v38
    %662 = vmatprep.subr.mxu0 0.0
    %663 = vmatpush1.msra.mxu0 %v39
    %664 = vmatprep.subr.mxu0 0.0
    %665 = vmatpush1.msra.mxu0 %v40
    %666 = vmatprep.subr.mxu0 0.0
    %667 = vmatpush1.msra.mxu0 0.0
    %668 = vmatprep.subr.mxu0 0.0
    %669 = vmatpush1.msra.mxu0 0.0
    %670 = vmatprep.subr.mxu0 0.0
    %671 = vmatpush1.msra.mxu0 0.0
    %672 = vmatprep.subr.mxu0 0.0
    %673 = vmatpush1.msra.mxu0 0.0
    %674 = vmatprep.subr.mxu0 0.0
    %675 = vmatpush1.msra.mxu0 0.0
    %676 = vmatprep.subr.mxu0 0.0
    %677 = vmatpush1.msra.mxu0 0.0
    %678 = vmatprep.subr.mxu0 0.0
    %679 = vmatpush1.msra.mxu0 0.0
    %680 = vmatprep.subr.mxu0 0.0
    %681 = vmatpush1.msra.mxu0 0.0
    %682 = vmatprep.subr.mxu0 0.0
    %683 = vmatpush1.msra.mxu0 0.0
    %684 = vmatprep.subr.mxu0 0.0
    %685 = vmatpush1.msra.mxu0 0.0
    %686 = vmatprep.subr.mxu0 0.0
    %687 = vmatpush1.msra.mxu0 0.0
    %688 = vmatprep.subr.mxu0 0.0
    %689 = vmatpush1.msra.mxu0 0.0
    %690 = vmatprep.subr.mxu0 0.0
    %691 = vmatpush1.msra.mxu0 0.0
    %692 = vmatprep.subr.mxu0 0.0
    %693 = vmatpush1.msra.mxu0 0.0
    %694 = vmatprep.subr.mxu0 0.0
    %695 = vmatpush1.msra.mxu0 0.0
    %696 = vmatprep.subr.mxu0 0.0
    %697 = vmatpush1.msra.mxu0 0.0
    %698 = vmatprep.subr.mxu0 0.0
    %699 = vmatpush1.msra.mxu0 0.0
    %700 = vmatprep.subr.mxu0 0.0
    %701 = vmatpush1.msra.mxu0 0.0
    %702 = vmatprep.subr.mxu0 0.0
    %703 = vmatpush1.msra.mxu0 0.0
    %704 = vmatprep.subr.mxu0 0.0
    %705 = vmatpush1.msra.mxu0 0.0
    %706 = vmatprep.subr.mxu0 0.0
    %707 = vmatpush1.msra.mxu0 0.0
    %708 = vmatprep.subr.mxu0 0.0
    %709 = vmatpush1.msra.mxu0 0.0
    %710 = vmatprep.subr.mxu0 0.0
    %711 = vmatpush1.msra.mxu0 0.0
    %712 = vmatprep.subr.mxu0 0.0
    %713 = vmatpush1.msra.mxu0 0.0
    %714 = vmatprep.subr.mxu0 0.0
    %715 = vmatpush1.msra.mxu0 0.0
    %716 = vmatprep.subr.mxu0 0.0
    %717 = vmatpush1.msra.mxu0 0.0
    %718 = vmatprep.subr.mxu0 0.0
    %719 = vmatpush1.msra.mxu0 0.0
    %720 = vmatprep.subr.mxu0 0.0
    %721 = vmatpush1.msra.mxu0 0.0
    %722 = vmatprep.mubr.f32.mxu0 0.0
    %723 = vmatmul.mubr.f32.gmra.mrb[0].mxu0 %v656
    %v724 = vpop.f32.mrb[0].mxu0
    %v725 = vadd.f32 0.0, %v724
    %v726 = vpop.f32.mrb[0].mxu0
    %727 = vdwg.mxu0
    %v729 = vrot.slane %v725, 6
    %v731 = vadd.f32 %v127, %v729
    %v732 = vxor.u32 %v731, 2147483648
    %v733 = vmul.f32 %v732, 1.442695
    %v734 = vpow.pop %v733
    %v735 = vadd.f32 %v734, 1.0
    %v736 = vrcp.pop %v735
    %v737 = vmul.f32 1.0, %v736
    %v738 = vtanh.pop %v731
    %v740 = vrot.slane %v646, 6
    %v742 = vmul.f32 %v737, %v740
    %744 = vrot.lane.b32.xlu0 %v738, 64
    %v745 = vpop.permute.xlu0 %744
    %v747 = vmul.f32 %v737, %v745
    %749 = vrot.lane.b32.xlu0 %v747, 32
    %v750 = vpop.permute.xlu0 %749
    %v752 = vadd.f32 %v742, %v750
    %v753 = vtanh.pop %v752
    %755 = vrot.lane.b32.xlu0 %v753, 64
    %v756 = vpop.permute.xlu0 %755
    %v758 = vmul.f32 %v737, %v756
    %v760 = vrot.slane %v758, 2
    %761 = vrot.lane.b32.xlu0 %v760, 32
    %v762 = vpop.permute.xlu0 %761
    %v763 = vsel %vm130, %v762, 0
    %765 = vmatprep.subr.mxu0 0.0
    %766 = vmatpush1.msra.mxu0 %v37
    %767 = vmatprep.subr.mxu0 0.0
    %768 = vmatpush1.msra.mxu0 %v38
    %769 = vmatprep.subr.mxu0 0.0
    %770 = vmatpush1.msra.mxu0 %v39
    %771 = vmatprep.subr.mxu0 0.0
    %772 = vmatpush1.msra.mxu0 %v40
    %773 = vmatprep.subr.mxu0 0.0
    %774 = vmatpush1.msra.mxu0 0.0
    %775 = vmatprep.subr.mxu0 0.0
    %776 = vmatpush1.msra.mxu0 0.0
    %777 = vmatprep.subr.mxu0 0.0
    %778 = vmatpush1.msra.mxu0 0.0
    %779 = vmatprep.subr.mxu0 0.0
    %780 = vmatpush1.msra.mxu0 0.0
    %781 = vmatprep.subr.mxu0 0.0
    %782 = vmatpush1.msra.mxu0 0.0
    %783 = vmatprep.subr.mxu0 0.0
    %784 = vmatpush1.msra.mxu0 0.0
    %785 = vmatprep.subr.mxu0 0.0
    %786 = vmatpush1.msra.mxu0 0.0
    %787 = vmatprep.subr.mxu0 0.0
    %788 = vmatpush1.msra.mxu0 0.0
    %789 = vmatprep.subr.mxu0 0.0
    %790 = vmatpush1.msra.mxu0 0.0
    %791 = vmatprep.subr.mxu0 0.0
    %792 = vmatpush1.msra.mxu0 0.0
    %793 = vmatprep.subr.mxu0 0.0
    %794 = vmatpush1.msra.mxu0 0.0
    %795 = vmatprep.subr.mxu0 0.0
    %796 = vmatpush1.msra.mxu0 0.0
    %797 = vmatprep.subr.mxu0 0.0
    %798 = vmatpush1.msra.mxu0 0.0
    %799 = vmatprep.subr.mxu0 0.0
    %800 = vmatpush1.msra.mxu0 0.0
    %801 = vmatprep.subr.mxu0 0.0
    %802 = vmatpush1.msra.mxu0 0.0
    %803 = vmatprep.subr.mxu0 0.0
    %804 = vmatpush1.msra.mxu0 0.0
    %805 = vmatprep.subr.mxu0 0.0
    %806 = vmatpush1.msra.mxu0 0.0
    %807 = vmatprep.subr.mxu0 0.0
    %808 = vmatpush1.msra.mxu0 0.0
    %809 = vmatprep.subr.mxu0 0.0
    %810 = vmatpush1.msra.mxu0 0.0
    %811 = vmatprep.subr.mxu0 0.0
    %812 = vmatpush1.msra.mxu0 0.0
    %813 = vmatprep.subr.mxu0 0.0
    %814 = vmatpush1.msra.mxu0 0.0
    %815 = vmatprep.subr.mxu0 0.0
    %816 = vmatpush1.msra.mxu0 0.0
    %817 = vmatprep.subr.mxu0 0.0
    %818 = vmatpush1.msra.mxu0 0.0
    %819 = vmatprep.subr.mxu0 0.0
    %820 = vmatpush1.msra.mxu0 0.0
    %821 = vmatprep.subr.mxu0 0.0
    %822 = vmatpush1.msra.mxu0 0.0
    %823 = vmatprep.subr.mxu0 0.0
    %824 = vmatpush1.msra.mxu0 0.0
    %825 = vmatprep.subr.mxu0 0.0
    %826 = vmatpush1.msra.mxu0 0.0
    %827 = vmatprep.subr.mxu0 0.0
    %828 = vmatpush1.msra.mxu0 0.0
    %829 = vmatprep.mubr.f32.mxu0 0.0
    %830 = vmatmul.mubr.f32.gmra.mrb[0].mxu0 %v763
    %v831 = vpop.f32.mrb[0].mxu0
    %v832 = vadd.f32 0.0, %v831
    %v833 = vpop.f32.mrb[0].mxu0
    %834 = vdwg.mxu0
    %v836 = vrot.slane %v832, 4
    %v838 = vadd.f32 %v127, %v836
    %v839 = vxor.u32 %v838, 2147483648
    %v840 = vmul.f32 %v839, 1.442695
    %v841 = vpow.pop %v840
    %v842 = vadd.f32 %v841, 1.0
    %v843 = vrcp.pop %v842
    %v844 = vmul.f32 1.0, %v843
    %v845 = vtanh.pop %v838
    %v847 = vrot.slane %v752, 6
    %v849 = vmul.f32 %v844, %v847
    %851 = vrot.lane.b32.xlu0 %v845, 64
    %v852 = vpop.permute.xlu0 %851
    %v854 = vmul.f32 %v844, %v852
    %856 = vrot.lane.b32.xlu0 %v854, 32
    %v857 = vpop.permute.xlu0 %856
    %v859 = vadd.f32 %v849, %v857
    %v860 = vtanh.pop %v859
    %862 = vrot.lane.b32.xlu0 %v860, 64
    %v863 = vpop.permute.xlu0 %862
    %v865 = vmul.f32 %v844, %v863
    %v867 = vrot.slane %v865, 4
    %868 = vrot.lane.b32.xlu0 %v867, 32
    %v869 = vpop.permute.xlu0 %868
    %v870 = vsel %vm130, %v869, 0
    %872 = vmatprep.subr.mxu0 0.0
    %873 = vmatpush1.msra.mxu0 %v37
    %874 = vmatprep.subr.mxu0 0.0
    %875 = vmatpush1.msra.mxu0 %v38
    %876 = vmatprep.subr.mxu0 0.0
    %877 = vmatpush1.msra.mxu0 %v39
    %878 = vmatprep.subr.mxu0 0.0
    %879 = vmatpush1.msra.mxu0 %v40
    %880 = vmatprep.subr.mxu0 0.0
    %881 = vmatpush1.msra.mxu0 0.0
    %882 = vmatprep.subr.mxu0 0.0
    %883 = vmatpush1.msra.mxu0 0.0
    %884 = vmatprep.subr.mxu0 0.0
    %885 = vmatpush1.msra.mxu0 0.0
    %886 = vmatprep.subr.mxu0 0.0
    %887 = vmatpush1.msra.mxu0 0.0
    %888 = vmatprep.subr.mxu0 0.0
    %889 = vmatpush1.msra.mxu0 0.0
    %890 = vmatprep.subr.mxu0 0.0
    %891 = vmatpush1.msra.mxu0 0.0
    %892 = vmatprep.subr.mxu0 0.0
    %893 = vmatpush1.msra.mxu0 0.0
    %894 = vmatprep.subr.mxu0 0.0
    %895 = vmatpush1.msra.mxu0 0.0
    %896 = vmatprep.subr.mxu0 0.0
    %897 = vmatpush1.msra.mxu0 0.0
    %898 = vmatprep.subr.mxu0 0.0
    %899 = vmatpush1.msra.mxu0 0.0
    %900 = vmatprep.subr.mxu0 0.0
    %901 = vmatpush1.msra.mxu0 0.0
    %902 = vmatprep.subr.mxu0 0.0
    %903 = vmatpush1.msra.mxu0 0.0
    %904 = vmatprep.subr.mxu0 0.0
    %905 = vmatpush1.msra.mxu0 0.0
    %906 = vmatprep.subr.mxu0 0.0
    %907 = vmatpush1.msra.mxu0 0.0
    %908 = vmatprep.subr.mxu0 0.0
    %909 = vmatpush1.msra.mxu0 0.0
    %910 = vmatprep.subr.mxu0 0.0
    %911 = vmatpush1.msra.mxu0 0.0
    %912 = vmatprep.subr.mxu0 0.0
    %913 = vmatpush1.msra.mxu0 0.0
    %914 = vmatprep.subr.mxu0 0.0
    %915 = vmatpush1.msra.mxu0 0.0
    %916 = vmatprep.subr.mxu0 0.0
    %917 = vmatpush1.msra.mxu0 0.0
    %918 = vmatprep.subr.mxu0 0.0
    %919 = vmatpush1.msra.mxu0 0.0
    %920 = vmatprep.subr.mxu0 0.0
    %921 = vmatpush1.msra.mxu0 0.0
    %922 = vmatprep.subr.mxu0 0.0
    %923 = vmatpush1.msra.mxu0 0.0
    %924 = vmatprep.subr.mxu0 0.0
    %925 = vmatpush1.msra.mxu0 0.0
    %926 = vmatprep.subr.mxu0 0.0
    %927 = vmatpush1.msra.mxu0 0.0
    %928 = vmatprep.subr.mxu0 0.0
    %929 = vmatpush1.msra.mxu0 0.0
    %930 = vmatprep.subr.mxu0 0.0
    %931 = vmatpush1.msra.mxu0 0.0
    %932 = vmatprep.subr.mxu0 0.0
    %933 = vmatpush1.msra.mxu0 0.0
    %934 = vmatprep.subr.mxu0 0.0
    %935 = vmatpush1.msra.mxu0 0.0
    %936 = vmatprep.mubr.f32.mxu0 0.0
    %937 = vmatmul.mubr.f32.gmra.mrb[0].mxu0 %v870
    %v938 = vpop.f32.mrb[0].mxu0
    %v939 = vadd.f32 0.0, %v938
    %v940 = vpop.f32.mrb[0].mxu0
    %941 = vdwg.mxu0
    %v943 = vrot.slane %v939, 2
    %v945 = vadd.f32 %v127, %v943
    %v946 = vxor.u32 %v945, 2147483648
    %v947 = vmul.f32 %v946, 1.442695
    %v948 = vpow.pop %v947
    %v949 = vadd.f32 %v948, 1.0
    %v950 = vrcp.pop %v949
    %v951 = vmul.f32 1.0, %v950
    %v952 = vtanh.pop %v945
    %v954 = vrot.slane %v859, 6
    %v956 = vmul.f32 %v951, %v954
    %958 = vrot.lane.b32.xlu0 %v952, 64
    %v959 = vpop.permute.xlu0 %958
    %v961 = vmul.f32 %v951, %v959
    %963 = vrot.lane.b32.xlu0 %v961, 32
    %v964 = vpop.permute.xlu0 %963
    %v966 = vadd.f32 %v956, %v964
    %v967 = vtanh.pop %v966
    %969 = vrot.lane.b32.xlu0 %v967, 64
    %v970 = vpop.permute.xlu0 %969
    %v972 = vmul.f32 %v951, %v970
    %vm973 = vcmask 1041408
    %v974 = vsel %vm973, %v228, %v334
    %vm975 = vcmask 1043456
    %v976 = vsel %vm975, %v974, %v441
    %vm977 = vcmask 1045504
    %v978 = vsel %vm977, %v976, %v548
    %v979 = vsel %vm973, %v652, %v758
    %v980 = vsel %vm975, %v979, %v865
    %v981 = vsel %vm977, %v980, %v972
    %v982 = vld [vmem:[%s4] sm:$0xff]
    %v983 = vld [vmem:[%s4 + $0x8] sm:$0xff]
    %v984 = vld [vmem:[%s4 + $0x10] sm:$0xff]
    %v985 = vld [vmem:[%s4 + $0x18] sm:$0xff]
    %v986 = vld [vmem:[%s5] sm:$0xff]
    %v987 = vld [vmem:[%s5 + $0x8] sm:$0xff]
    %v988 = vld [vmem:[%s5 + $0x10] sm:$0xff]
    %v989 = vld [vmem:[%s5 + $0x18] sm:$0xff]
    %v990 = vld [vmem:[%s6] sm:$0x1]
    %v992 = vlaneseq
    %v993 = vshrl.u32 %v992, 7
    %v994 = vsub.s32 0, %v993
    %v995 = vrot.slane %v990, %v994
    %999 = vrot.lane.b32.xlu0 %v978, 32
    %v1000 = vpop.permute.xlu0 %999
    %1001 = vrot.lane.b32.xlu0 %v981, 32
    %v1002 = vpop.permute.xlu0 %1001
    %v1003 = vsel %vm130, %v1000, 0
    %v1005 = vsel %vm130, %v1002, 0
    %1007 = vmatprep.subr.mxu0 0.0
    %1008 = vmatpush1.msra.mxu0 %v982
    %1009 = vmatprep.subr.mxu0 0.0
    %1010 = vmatpush1.msra.mxu0 %v983
    %1011 = vmatprep.subr.mxu0 0.0
    %1012 = vmatpush1.msra.mxu0 %v984
    %1013 = vmatprep.subr.mxu0 0.0
    %1014 = vmatpush1.msra.mxu0 %v985
    %1015 = vmatprep.subr.mxu0 0.0
    %1016 = vmatpush1.msra.mxu0 0.0
    %1017 = vmatprep.subr.mxu0 0.0
    %1018 = vmatpush1.msra.mxu0 0.0
    %1019 = vmatprep.subr.mxu0 0.0
    %1020 = vmatpush1.msra.mxu0 0.0
    %1021 = vmatprep.subr.mxu0 0.0
    %1022 = vmatpush1.msra.mxu0 0.0
    %1023 = vmatprep.subr.mxu0 0.0
    %1024 = vmatpush1.msra.mxu0 0.0
    %1025 = vmatprep.subr.mxu0 0.0
    %1026 = vmatpush1.msra.mxu0 0.0
    %1027 = vmatprep.subr.mxu0 0.0
    %1028 = vmatpush1.msra.mxu0 0.0
    %1029 = vmatprep.subr.mxu0 0.0
    %1030 = vmatpush1.msra.mxu0 0.0
    %1031 = vmatprep.subr.mxu0 0.0
    %1032 = vmatpush1.msra.mxu0 0.0
    %1033 = vmatprep.subr.mxu0 0.0
    %1034 = vmatpush1.msra.mxu0 0.0
    %1035 = vmatprep.subr.mxu0 0.0
    %1036 = vmatpush1.msra.mxu0 0.0
    %1037 = vmatprep.subr.mxu0 0.0
    %1038 = vmatpush1.msra.mxu0 0.0
    %1039 = vmatprep.subr.mxu0 0.0
    %1040 = vmatpush1.msra.mxu0 0.0
    %1041 = vmatprep.subr.mxu0 0.0
    %1042 = vmatpush1.msra.mxu0 0.0
    %1043 = vmatprep.subr.mxu0 0.0
    %1044 = vmatpush1.msra.mxu0 0.0
    %1045 = vmatprep.subr.mxu0 0.0
    %1046 = vmatpush1.msra.mxu0 0.0
    %1047 = vmatprep.subr.mxu0 0.0
    %1048 = vmatpush1.msra.mxu0 0.0
    %1049 = vmatprep.subr.mxu0 0.0
    %1050 = vmatpush1.msra.mxu0 0.0
    %1051 = vmatprep.subr.mxu0 0.0
    %1052 = vmatpush1.msra.mxu0 0.0
    %1053 = vmatprep.subr.mxu0 0.0
    %1054 = vmatpush1.msra.mxu0 0.0
    %1055 = vmatprep.subr.mxu0 0.0
    %1056 = vmatpush1.msra.mxu0 0.0
    %1057 = vmatprep.subr.mxu0 0.0
    %1058 = vmatpush1.msra.mxu0 0.0
    %1059 = vmatprep.subr.mxu0 0.0
    %1060 = vmatpush1.msra.mxu0 0.0
    %1061 = vmatprep.subr.mxu0 0.0
    %1062 = vmatpush1.msra.mxu0 0.0
    %1063 = vmatprep.subr.mxu0 0.0
    %1064 = vmatpush1.msra.mxu0 0.0
    %1065 = vmatprep.subr.mxu0 0.0
    %1066 = vmatpush1.msra.mxu0 0.0
    %1067 = vmatprep.subr.mxu0 0.0
    %1068 = vmatpush1.msra.mxu0 0.0
    %1069 = vmatprep.subr.mxu0 0.0
    %1070 = vmatpush1.msra.mxu0 0.0
    %1071 = vmatprep.mubr.f32.mxu0 0.0
    %1072 = vmatmul.mubr.f32.gmra.mrb[0].mxu0 %v1003
    %v1073 = vpop.f32.mrb[0].mxu0
    %v1074 = vadd.f32 %v995, %v1073
    %v1075 = vpop.f32.mrb[0].mxu0
    %1076 = vmatprep.mubr.f32.mxu0 0.0
    %1077 = vmatmul.mubr.f32.gmra.mrb[0].mxu0 %v1005
    %v1078 = vpop.f32.mrb[0].mxu0
    %v1079 = vadd.f32 %v995, %v1078
    %v1080 = vpop.f32.mrb[0].mxu0
    %1081 = vdwg.mxu0
    %1082 = vmatprep.subr.mxu0 0.0
    %1083 = vmatpush1.msra.mxu0 %v986
    %1084 = vmatprep.subr.mxu0 0.0
    %1085 = vmatpush1.msra.mxu0 %v987
    %1086 = vmatprep.subr.mxu0 0.0
    %1087 = vmatpush1.msra.mxu0 %v988
    %1088 = vmatprep.subr.mxu0 0.0
    %1089 = vmatpush1.msra.mxu0 %v989
    %1090 = vmatprep.subr.mxu0 0.0
    %1091 = vmatpush1.msra.mxu0 0.0
    %1092 = vmatprep.subr.mxu0 0.0
    %1093 = vmatpush1.msra.mxu0 0.0
    %1094 = vmatprep.subr.mxu0 0.0
    %1095 = vmatpush1.msra.mxu0 0.0
    %1096 = vmatprep.subr.mxu0 0.0
    %1097 = vmatpush1.msra.mxu0 0.0
    %1098 = vmatprep.subr.mxu0 0.0
    %1099 = vmatpush1.msra.mxu0 0.0
    %1100 = vmatprep.subr.mxu0 0.0
    %1101 = vmatpush1.msra.mxu0 0.0
    %1102 = vmatprep.subr.mxu0 0.0
    %1103 = vmatpush1.msra.mxu0 0.0
    %1104 = vmatprep.subr.mxu0 0.0
    %1105 = vmatpush1.msra.mxu0 0.0
    %1106 = vmatprep.subr.mxu0 0.0
    %1107 = vmatpush1.msra.mxu0 0.0
    %1108 = vmatprep.subr.mxu0 0.0
    %1109 = vmatpush1.msra.mxu0 0.0
    %1110 = vmatprep.subr.mxu0 0.0
    %1111 = vmatpush1.msra.mxu0 0.0
    %1112 = vmatprep.subr.mxu0 0.0
    %1113 = vmatpush1.msra.mxu0 0.0
    %1114 = vmatprep.subr.mxu0 0.0
    %1115 = vmatpush1.msra.mxu0 0.0
    %1116 = vmatprep.subr.mxu0 0.0
    %1117 = vmatpush1.msra.mxu0 0.0
    %1118 = vmatprep.subr.mxu0 0.0
    %1119 = vmatpush1.msra.mxu0 0.0
    %1120 = vmatprep.subr.mxu0 0.0
    %1121 = vmatpush1.msra.mxu0 0.0
    %1122 = vmatprep.subr.mxu0 0.0
    %1123 = vmatpush1.msra.mxu0 0.0
    %1124 = vmatprep.subr.mxu0 0.0
    %1125 = vmatpush1.msra.mxu0 0.0
    %1126 = vmatprep.subr.mxu0 0.0
    %1127 = vmatpush1.msra.mxu0 0.0
    %1128 = vmatprep.subr.mxu0 0.0
    %1129 = vmatpush1.msra.mxu0 0.0
    %1130 = vmatprep.subr.mxu0 0.0
    %1131 = vmatpush1.msra.mxu0 0.0
    %1132 = vmatprep.subr.mxu0 0.0
    %1133 = vmatpush1.msra.mxu0 0.0
    %1134 = vmatprep.subr.mxu0 0.0
    %1135 = vmatpush1.msra.mxu0 0.0
    %1136 = vmatprep.subr.mxu0 0.0
    %1137 = vmatpush1.msra.mxu0 0.0
    %1138 = vmatprep.subr.mxu0 0.0
    %1139 = vmatpush1.msra.mxu0 0.0
    %1140 = vmatprep.subr.mxu0 0.0
    %1141 = vmatpush1.msra.mxu0 0.0
    %1142 = vmatprep.subr.mxu0 0.0
    %1143 = vmatpush1.msra.mxu0 0.0
    %1144 = vmatprep.subr.mxu0 0.0
    %1145 = vmatpush1.msra.mxu0 0.0
    %1146 = vmatprep.mubr.f32.mxu0 0.0
    %1147 = vmatmul.mubr.f32.gmra.mrb[0].mxu0 %v132
    %v1148 = vpop.f32.mrb[0].mxu0
    %v1149 = vadd.f32 0.0, %v1148
    %v1150 = vpop.f32.mrb[0].mxu0
    %1151 = vdwg.mxu0
    %v1152 = vadd.f32 %v1074, %v1149
    %v1153 = vxor.u32 %v1152, 2147483648
    %v1154 = vmul.f32 %v1153, 1.442695
    %v1155 = vpow.pop %v1154
    %v1156 = vadd.f32 %v1155, 1.0
    %v1157 = vrcp.pop %v1156
    %v1158 = vmul.f32 1.0, %v1157
    %v1159 = vtanh.pop %v1152
    %v1160 = vmul.f32 %v1158, 0.0
    %1162 = vrot.lane.b32.xlu0 %v1159, 64
    %v1163 = vpop.permute.xlu0 %1162
    %v1165 = vmul.f32 %v1158, %v1163
    %1167 = vrot.lane.b32.xlu0 %v1165, 32
    %v1168 = vpop.permute.xlu0 %1167
    %v1170 = vadd.f32 %v1160, %v1168
    %v1171 = vtanh.pop %v1170
    %1173 = vrot.lane.b32.xlu0 %v1171, 64
    %v1174 = vpop.permute.xlu0 %1173
    %v1176 = vmul.f32 %v1158, %v1174
    %1178 = vrot.lane.b32.xlu0 %v1176, 32
    %v1179 = vpop.permute.xlu0 %1178
    %v1180 = vsel %vm130, %v1179, 0
    %1182 = vmatprep.subr.mxu0 0.0
    %1183 = vmatpush1.msra.mxu0 %v986
    %1184 = vmatprep.subr.mxu0 0.0
    %1185 = vmatpush1.msra.mxu0 %v987
    %1186 = vmatprep.subr.mxu0 0.0
    %1187 = vmatpush1.msra.mxu0 %v988
    %1188 = vmatprep.subr.mxu0 0.0
    %1189 = vmatpush1.msra.mxu0 %v989
    %1190 = vmatprep.subr.mxu0 0.0
    %1191 = vmatpush1.msra.mxu0 0.0
    %1192 = vmatprep.subr.mxu0 0.0
    %1193 = vmatpush1.msra.mxu0 0.0
    %1194 = vmatprep.subr.mxu0 0.0
    %1195 = vmatpush1.msra.mxu0 0.0
    %1196 = vmatprep.subr.mxu0 0.0
    %1197 = vmatpush1.msra.mxu0 0.0
    %1198 = vmatprep.subr.mxu0 0.0
    %1199 = vmatpush1.msra.mxu0 0.0
    %1200 = vmatprep.subr.mxu0 0.0
    %1201 = vmatpush1.msra.mxu0 0.0
    %1202 = vmatprep.subr.mxu0 0.0
    %1203 = vmatpush1.msra.mxu0 0.0
    %1204 = vmatprep.subr.mxu0 0.0
    %1205 = vmatpush1.msra.mxu0 0.0
    %1206 = vmatprep.subr.mxu0 0.0
    %1207 = vmatpush1.msra.mxu0 0.0
    %1208 = vmatprep.subr.mxu0 0.0
    %1209 = vmatpush1.msra.mxu0 0.0
    %1210 = vmatprep.subr.mxu0 0.0
    %1211 = vmatpush1.msra.mxu0 0.0
    %1212 = vmatprep.subr.mxu0 0.0
    %1213 = vmatpush1.msra.mxu0 0.0
    %1214 = vmatprep.subr.mxu0 0.0
    %1215 = vmatpush1.msra.mxu0 0.0
    %1216 = vmatprep.subr.mxu0 0.0
    %1217 = vmatpush1.msra.mxu0 0.0
    %1218 = vmatprep.subr.mxu0 0.0
    %1219 = vmatpush1.msra.mxu0 0.0
    %1220 = vmatprep.subr.mxu0 0.0
    %1221 = vmatpush1.msra.mxu0 0.0
    %1222 = vmatprep.subr.mxu0 0.0
    %1223 = vmatpush1.msra.mxu0 0.0
    %1224 = vmatprep.subr.mxu0 0.0
    %1225 = vmatpush1.msra.mxu0 0.0
    %1226 = vmatprep.subr.mxu0 0.0
    %1227 = vmatpush1.msra.mxu0 0.0
    %1228 = vmatprep.subr.mxu0 0.0
    %1229 = vmatpush1.msra.mxu0 0.0
    %1230 = vmatprep.subr.mxu0 0.0
    %1231 = vmatpush1.msra.mxu0 0.0
    %1232 = vmatprep.subr.mxu0 0.0
    %1233 = vmatpush1.msra.mxu0 0.0
    %1234 = vmatprep.subr.mxu0 0.0
    %1235 = vmatpush1.msra.mxu0 0.0
    %1236 = vmatprep.subr.mxu0 0.0
    %1237 = vmatpush1.msra.mxu0 0.0
    %1238 = vmatprep.subr.mxu0 0.0
    %1239 = vmatpush1.msra.mxu0 0.0
    %1240 = vmatprep.subr.mxu0 0.0
    %1241 = vmatpush1.msra.mxu0 0.0
    %1242 = vmatprep.subr.mxu0 0.0
    %1243 = vmatpush1.msra.mxu0 0.0
    %1244 = vmatprep.subr.mxu0 0.0
    %1245 = vmatpush1.msra.mxu0 0.0
    %1246 = vmatprep.mubr.f32.mxu0 0.0
    %1247 = vmatmul.mubr.f32.gmra.mrb[0].mxu0 %v1180
    %v1248 = vpop.f32.mrb[0].mxu0
    %v1249 = vadd.f32 0.0, %v1248
    %v1250 = vpop.f32.mrb[0].mxu0
    %1251 = vdwg.mxu0
    %v1253 = vrot.slane %v1249, 6
    %v1255 = vadd.f32 %v1074, %v1253
    %v1256 = vxor.u32 %v1255, 2147483648
    %v1257 = vmul.f32 %v1256, 1.442695
    %v1258 = vpow.pop %v1257
    %v1259 = vadd.f32 %v1258, 1.0
    %v1260 = vrcp.pop %v1259
    %v1261 = vmul.f32 1.0, %v1260
    %v1262 = vtanh.pop %v1255
    %v1264 = vrot.slane %v1170, 6
    %v1266 = vmul.f32 %v1261, %v1264
    %1268 = vrot.lane.b32.xlu0 %v1262, 64
    %v1269 = vpop.permute.xlu0 %1268
    %v1271 = vmul.f32 %v1261, %v1269
    %1273 = vrot.lane.b32.xlu0 %v1271, 32
    %v1274 = vpop.permute.xlu0 %1273
    %v1276 = vadd.f32 %v1266, %v1274
    %v1277 = vtanh.pop %v1276
    %1279 = vrot.lane.b32.xlu0 %v1277, 64
    %v1280 = vpop.permute.xlu0 %1279
    %v1282 = vmul.f32 %v1261, %v1280
    %v1284 = vrot.slane %v1282, 2
    %1285 = vrot.lane.b32.xlu0 %v1284, 32
    %v1286 = vpop.permute.xlu0 %1285
    %v1287 = vsel %vm130, %v1286, 0
    %1289 = vmatprep.subr.mxu0 0.0
    %1290 = vmatpush1.msra.mxu0 %v986
    %1291 = vmatprep.subr.mxu0 0.0
    %1292 = vmatpush1.msra.mxu0 %v987
    %1293 = vmatprep.subr.mxu0 0.0
    %1294 = vmatpush1.msra.mxu0 %v988
    %1295 = vmatprep.subr.mxu0 0.0
    %1296 = vmatpush1.msra.mxu0 %v989
    %1297 = vmatprep.subr.mxu0 0.0
    %1298 = vmatpush1.msra.mxu0 0.0
    %1299 = vmatprep.subr.mxu0 0.0
    %1300 = vmatpush1.msra.mxu0 0.0
    %1301 = vmatprep.subr.mxu0 0.0
    %1302 = vmatpush1.msra.mxu0 0.0
    %1303 = vmatprep.subr.mxu0 0.0
    %1304 = vmatpush1.msra.mxu0 0.0
    %1305 = vmatprep.subr.mxu0 0.0
    %1306 = vmatpush1.msra.mxu0 0.0
    %1307 = vmatprep.subr.mxu0 0.0
    %1308 = vmatpush1.msra.mxu0 0.0
    %1309 = vmatprep.subr.mxu0 0.0
    %1310 = vmatpush1.msra.mxu0 0.0
    %1311 = vmatprep.subr.mxu0 0.0
    %1312 = vmatpush1.msra.mxu0 0.0
    %1313 = vmatprep.subr.mxu0 0.0
    %1314 = vmatpush1.msra.mxu0 0.0
    %1315 = vmatprep.subr.mxu0 0.0
    %1316 = vmatpush1.msra.mxu0 0.0
    %1317 = vmatprep.subr.mxu0 0.0
    %1318 = vmatpush1.msra.mxu0 0.0
    %1319 = vmatprep.subr.mxu0 0.0
    %1320 = vmatpush1.msra.mxu0 0.0
    %1321 = vmatprep.subr.mxu0 0.0
    %1322 = vmatpush1.msra.mxu0 0.0
    %1323 = vmatprep.subr.mxu0 0.0
    %1324 = vmatpush1.msra.mxu0 0.0
    %1325 = vmatprep.subr.mxu0 0.0
    %1326 = vmatpush1.msra.mxu0 0.0
    %1327 = vmatprep.subr.mxu0 0.0
    %1328 = vmatpush1.msra.mxu0 0.0
    %1329 = vmatprep.subr.mxu0 0.0
    %1330 = vmatpush1.msra.mxu0 0.0
    %1331 = vmatprep.subr.mxu0 0.0
    %1332 = vmatpush1.msra.mxu0 0.0
    %1333 = vmatprep.subr.mxu0 0.0
    %1334 = vmatpush1.msra.mxu0 0.0
    %1335 = vmatprep.subr.mxu0 0.0
    %1336 = vmatpush1.msra.mxu0 0.0
    %1337 = vmatprep.subr.mxu0 0.0
    %1338 = vmatpush1.msra.mxu0 0.0
    %1339 = vmatprep.subr.mxu0 0.0
    %1340 = vmatpush1.msra.mxu0 0.0
    %1341 = vmatprep.subr.mxu0 0.0
    %1342 = vmatpush1.msra.mxu0 0.0
    %1343 = vmatprep.subr.mxu0 0.0
    %1344 = vmatpush1.msra.mxu0 0.0
    %1345 = vmatprep.subr.mxu0 0.0
    %1346 = vmatpush1.msra.mxu0 0.0
    %1347 = vmatprep.subr.mxu0 0.0
    %1348 = vmatpush1.msra.mxu0 0.0
    %1349 = vmatprep.subr.mxu0 0.0
    %1350 = vmatpush1.msra.mxu0 0.0
    %1351 = vmatprep.subr.mxu0 0.0
    %1352 = vmatpush1.msra.mxu0 0.0
    %1353 = vmatprep.mubr.f32.mxu0 0.0
    %1354 = vmatmul.mubr.f32.gmra.mrb[0].mxu0 %v1287
    %v1355 = vpop.f32.mrb[0].mxu0
    %v1356 = vadd.f32 0.0, %v1355
    %v1357 = vpop.f32.mrb[0].mxu0
    %1358 = vdwg.mxu0
    %v1360 = vrot.slane %v1356, 4
    %v1362 = vadd.f32 %v1074, %v1360
    %v1363 = vxor.u32 %v1362, 2147483648
    %v1364 = vmul.f32 %v1363, 1.442695
    %v1365 = vpow.pop %v1364
    %v1366 = vadd.f32 %v1365, 1.0
    %v1367 = vrcp.pop %v1366
    %v1368 = vmul.f32 1.0, %v1367
    %v1369 = vtanh.pop %v1362
    %v1371 = vrot.slane %v1276, 6
    %v1373 = vmul.f32 %v1368, %v1371
    %1375 = vrot.lane.b32.xlu0 %v1369, 64
    %v1376 = vpop.permute.xlu0 %1375
    %v1378 = vmul.f32 %v1368, %v1376
    %1380 = vrot.lane.b32.xlu0 %v1378, 32
    %v1381 = vpop.permute.xlu0 %1380
    %v1383 = vadd.f32 %v1373, %v1381
    %v1384 = vtanh.pop %v1383
    %1386 = vrot.lane.b32.xlu0 %v1384, 64
    %v1387 = vpop.permute.xlu0 %1386
    %v1389 = vmul.f32 %v1368, %v1387
    %v1391 = vrot.slane %v1389, 4
    %1392 = vrot.lane.b32.xlu0 %v1391, 32
    %v1393 = vpop.permute.xlu0 %1392
    %v1394 = vsel %vm130, %v1393, 0
    %1396 = vmatprep.subr.mxu0 0.0
    %1397 = vmatpush1.msra.mxu0 %v986
    %1398 = vmatprep.subr.mxu0 0.0
    %1399 = vmatpush1.msra.mxu0 %v987
    %1400 = vmatprep.subr.mxu0 0.0
    %1401 = vmatpush1.msra.mxu0 %v988
    %1402 = vmatprep.subr.mxu0 0.0
    %1403 = vmatpush1.msra.mxu0 %v989
    %1404 = vmatprep.subr.mxu0 0.0
    %1405 = vmatpush1.msra.mxu0 0.0
    %1406 = vmatprep.subr.mxu0 0.0
    %1407 = vmatpush1.msra.mxu0 0.0
    %1408 = vmatprep.subr.mxu0 0.0
    %1409 = vmatpush1.msra.mxu0 0.0
    %1410 = vmatprep.subr.mxu0 0.0
    %1411 = vmatpush1.msra.mxu0 0.0
    %1412 = vmatprep.subr.mxu0 0.0
    %1413 = vmatpush1.msra.mxu0 0.0
    %1414 = vmatprep.subr.mxu0 0.0
    %1415 = vmatpush1.msra.mxu0 0.0
    %1416 = vmatprep.subr.mxu0 0.0
    %1417 = vmatpush1.msra.mxu0 0.0
    %1418 = vmatprep.subr.mxu0 0.0
    %1419 = vmatpush1.msra.mxu0 0.0
    %1420 = vmatprep.subr.mxu0 0.0
    %1421 = vmatpush1.msra.mxu0 0.0
    %1422 = vmatprep.subr.mxu0 0.0
    %1423 = vmatpush1.msra.mxu0 0.0
    %1424 = vmatprep.subr.mxu0 0.0
    %1425 = vmatpush1.msra.mxu0 0.0
    %1426 = vmatprep.subr.mxu0 0.0
    %1427 = vmatpush1.msra.mxu0 0.0
    %1428 = vmatprep.subr.mxu0 0.0
    %1429 = vmatpush1.msra.mxu0 0.0
    %1430 = vmatprep.subr.mxu0 0.0
    %1431 = vmatpush1.msra.mxu0 0.0
    %1432 = vmatprep.subr.mxu0 0.0
    %1433 = vmatpush1.msra.mxu0 0.0
    %1434 = vmatprep.subr.mxu0 0.0
    %1435 = vmatpush1.msra.mxu0 0.0
    %1436 = vmatprep.subr.mxu0 0.0
    %1437 = vmatpush1.msra.mxu0 0.0
    %1438 = vmatprep.subr.mxu0 0.0
    %1439 = vmatpush1.msra.mxu0 0.0
    %1440 = vmatprep.subr.mxu0 0.0
    %1441 = vmatpush1.msra.mxu0 0.0
    %1442 = vmatprep.subr.mxu0 0.0
    %1443 = vmatpush1.msra.mxu0 0.0
    %1444 = vmatprep.subr.mxu0 0.0
    %1445 = vmatpush1.msra.mxu0 0.0
    %1446 = vmatprep.subr.mxu0 0.0
    %1447 = vmatpush1.msra.mxu0 0.0
    %1448 = vmatprep.subr.mxu0 0.0
    %1449 = vmatpush1.msra.mxu0 0.0
    %1450 = vmatprep.subr.mxu0 0.0
    %1451 = vmatpush1.msra.mxu0 0.0
    %1452 = vmatprep.subr.mxu0 0.0
    %1453 = vmatpush1.msra.mxu0 0.0
    %1454 = vmatprep.subr.mxu0 0.0
    %1455 = vmatpush1.msra.mxu0 0.0
    %1456 = vmatprep.subr.mxu0 0.0
    %1457 = vmatpush1.msra.mxu0 0.0
    %1458 = vmatprep.subr.mxu0 0.0
    %1459 = vmatpush1.msra.mxu0 0.0
    %1460 = vmatprep.mubr.f32.mxu0 0.0
    %1461 = vmatmul.mubr.f32.gmra.mrb[0].mxu0 %v1394
    %v1462 = vpop.f32.mrb[0].mxu0
    %v1463 = vadd.f32 0.0, %v1462
    %v1464 = vpop.f32.mrb[0].mxu0
    %1465 = vdwg.mxu0
    %v1467 = vrot.slane %v1463, 2
    %v1469 = vadd.f32 %v1074, %v1467
    %v1470 = vxor.u32 %v1469, 2147483648
    %v1471 = vmul.f32 %v1470, 1.442695
    %v1472 = vpow.pop %v1471
    %v1473 = vadd.f32 %v1472, 1.0
    %v1474 = vrcp.pop %v1473
    %v1475 = vmul.f32 1.0, %v1474
    %v1476 = vtanh.pop %v1469
    %v1478 = vrot.slane %v1383, 6
    %v1480 = vmul.f32 %v1475, %v1478
    %1482 = vrot.lane.b32.xlu0 %v1476, 64
    %v1483 = vpop.permute.xlu0 %1482
    %v1485 = vmul.f32 %v1475, %v1483
    %1487 = vrot.lane.b32.xlu0 %v1485, 32
    %v1488 = vpop.permute.xlu0 %1487
    %v1490 = vadd.f32 %v1480, %v1488
    %v1491 = vtanh.pop %v1490
    %1493 = vrot.lane.b32.xlu0 %v1491, 64
    %v1494 = vpop.permute.xlu0 %1493
    %v1496 = vmul.f32 %v1475, %v1494
    %v1498 = vrot.slane %v1496, 6
    %1499 = vrot.lane.b32.xlu0 %v1498, 32
    %v1500 = vpop.permute.xlu0 %1499
    %v1501 = vsel %vm130, %v1500, 0
    %1503 = vmatprep.subr.mxu0 0.0
    %1504 = vmatpush1.msra.mxu0 %v986
    %1505 = vmatprep.subr.mxu0 0.0
    %1506 = vmatpush1.msra.mxu0 %v987
    %1507 = vmatprep.subr.mxu0 0.0
    %1508 = vmatpush1.msra.mxu0 %v988
    %1509 = vmatprep.subr.mxu0 0.0
    %1510 = vmatpush1.msra.mxu0 %v989
    %1511 = vmatprep.subr.mxu0 0.0
    %1512 = vmatpush1.msra.mxu0 0.0
    %1513 = vmatprep.subr.mxu0 0.0
    %1514 = vmatpush1.msra.mxu0 0.0
    %1515 = vmatprep.subr.mxu0 0.0
    %1516 = vmatpush1.msra.mxu0 0.0
    %1517 = vmatprep.subr.mxu0 0.0
    %1518 = vmatpush1.msra.mxu0 0.0
    %1519 = vmatprep.subr.mxu0 0.0
    %1520 = vmatpush1.msra.mxu0 0.0
    %1521 = vmatprep.subr.mxu0 0.0
    %1522 = vmatpush1.msra.mxu0 0.0
    %1523 = vmatprep.subr.mxu0 0.0
    %1524 = vmatpush1.msra.mxu0 0.0
    %1525 = vmatprep.subr.mxu0 0.0
    %1526 = vmatpush1.msra.mxu0 0.0
    %1527 = vmatprep.subr.mxu0 0.0
    %1528 = vmatpush1.msra.mxu0 0.0
    %1529 = vmatprep.subr.mxu0 0.0
    %1530 = vmatpush1.msra.mxu0 0.0
    %1531 = vmatprep.subr.mxu0 0.0
    %1532 = vmatpush1.msra.mxu0 0.0
    %1533 = vmatprep.subr.mxu0 0.0
    %1534 = vmatpush1.msra.mxu0 0.0
    %1535 = vmatprep.subr.mxu0 0.0
    %1536 = vmatpush1.msra.mxu0 0.0
    %1537 = vmatprep.subr.mxu0 0.0
    %1538 = vmatpush1.msra.mxu0 0.0
    %1539 = vmatprep.subr.mxu0 0.0
    %1540 = vmatpush1.msra.mxu0 0.0
    %1541 = vmatprep.subr.mxu0 0.0
    %1542 = vmatpush1.msra.mxu0 0.0
    %1543 = vmatprep.subr.mxu0 0.0
    %1544 = vmatpush1.msra.mxu0 0.0
    %1545 = vmatprep.subr.mxu0 0.0
    %1546 = vmatpush1.msra.mxu0 0.0
    %1547 = vmatprep.subr.mxu0 0.0
    %1548 = vmatpush1.msra.mxu0 0.0
    %1549 = vmatprep.subr.mxu0 0.0
    %1550 = vmatpush1.msra.mxu0 0.0
    %1551 = vmatprep.subr.mxu0 0.0
    %1552 = vmatpush1.msra.mxu0 0.0
    %1553 = vmatprep.subr.mxu0 0.0
    %1554 = vmatpush1.msra.mxu0 0.0
    %1555 = vmatprep.subr.mxu0 0.0
    %1556 = vmatpush1.msra.mxu0 0.0
    %1557 = vmatprep.subr.mxu0 0.0
    %1558 = vmatpush1.msra.mxu0 0.0
    %1559 = vmatprep.subr.mxu0 0.0
    %1560 = vmatpush1.msra.mxu0 0.0
    %1561 = vmatprep.subr.mxu0 0.0
    %1562 = vmatpush1.msra.mxu0 0.0
    %1563 = vmatprep.subr.mxu0 0.0
    %1564 = vmatpush1.msra.mxu0 0.0
    %1565 = vmatprep.subr.mxu0 0.0
    %1566 = vmatpush1.msra.mxu0 0.0
    %1567 = vmatprep.mubr.f32.mxu0 0.0
    %1568 = vmatmul.mubr.f32.gmra.mrb[0].mxu0 %v1501
    %v1569 = vpop.f32.mrb[0].mxu0
    %v1570 = vadd.f32 0.0, %v1569
    %v1571 = vpop.f32.mrb[0].mxu0
    %1572 = vdwg.mxu0
    %v1573 = vadd.f32 %v1079, %v1570
    %v1574 = vxor.u32 %v1573, 2147483648
    %v1575 = vmul.f32 %v1574, 1.442695
    %v1576 = vpow.pop %v1575
    %v1577 = vadd.f32 %v1576, 1.0
    %v1578 = vrcp.pop %v1577
    %v1579 = vmul.f32 1.0, %v1578
    %v1580 = vtanh.pop %v1573
    %v1582 = vrot.slane %v1490, 6
    %v1584 = vmul.f32 %v1579, %v1582
    %1586 = vrot.lane.b32.xlu0 %v1580, 64
    %v1587 = vpop.permute.xlu0 %1586
    %v1589 = vmul.f32 %v1579, %v1587
    %1591 = vrot.lane.b32.xlu0 %v1589, 32
    %v1592 = vpop.permute.xlu0 %1591
    %v1594 = vadd.f32 %v1584, %v1592
    %v1595 = vtanh.pop %v1594
    %1597 = vrot.lane.b32.xlu0 %v1595, 64
    %v1598 = vpop.permute.xlu0 %1597
    %v1600 = vmul.f32 %v1579, %v1598
    %1602 = vrot.lane.b32.xlu0 %v1600, 32
    %v1603 = vpop.permute.xlu0 %1602
    %v1604 = vsel %vm130, %v1603, 0
    %1606 = vmatprep.subr.mxu0 0.0
    %1607 = vmatpush1.msra.mxu0 %v986
    %1608 = vmatprep.subr.mxu0 0.0
    %1609 = vmatpush1.msra.mxu0 %v987
    %1610 = vmatprep.subr.mxu0 0.0
    %1611 = vmatpush1.msra.mxu0 %v988
    %1612 = vmatprep.subr.mxu0 0.0
    %1613 = vmatpush1.msra.mxu0 %v989
    %1614 = vmatprep.subr.mxu0 0.0
    %1615 = vmatpush1.msra.mxu0 0.0
    %1616 = vmatprep.subr.mxu0 0.0
    %1617 = vmatpush1.msra.mxu0 0.0
    %1618 = vmatprep.subr.mxu0 0.0
    %1619 = vmatpush1.msra.mxu0 0.0
    %1620 = vmatprep.subr.mxu0 0.0
    %1621 = vmatpush1.msra.mxu0 0.0
    %1622 = vmatprep.subr.mxu0 0.0
    %1623 = vmatpush1.msra.mxu0 0.0
    %1624 = vmatprep.subr.mxu0 0.0
    %1625 = vmatpush1.msra.mxu0 0.0
    %1626 = vmatprep.subr.mxu0 0.0
    %1627 = vmatpush1.msra.mxu0 0.0
    %1628 = vmatprep.subr.mxu0 0.0
    %1629 = vmatpush1.msra.mxu0 0.0
    %1630 = vmatprep.subr.mxu0 0.0
    %1631 = vmatpush1.msra.mxu0 0.0
    %1632 = vmatprep.subr.mxu0 0.0
    %1633 = vmatpush1.msra.mxu0 0.0
    %1634 = vmatprep.subr.mxu0 0.0
    %1635 = vmatpush1.msra.mxu0 0.0
    %1636 = vmatprep.subr.mxu0 0.0
    %1637 = vmatpush1.msra.mxu0 0.0
    %1638 = vmatprep.subr.mxu0 0.0
    %1639 = vmatpush1.msra.mxu0 0.0
    %1640 = vmatprep.subr.mxu0 0.0
    %1641 = vmatpush1.msra.mxu0 0.0
    %1642 = vmatprep.subr.mxu0 0.0
    %1643 = vmatpush1.msra.mxu0 0.0
    %1644 = vmatprep.subr.mxu0 0.0
    %1645 = vmatpush1.msra.mxu0 0.0
    %1646 = vmatprep.subr.mxu0 0.0
    %1647 = vmatpush1.msra.mxu0 0.0
    %1648 = vmatprep.subr.mxu0 0.0
    %1649 = vmatpush1.msra.mxu0 0.0
    %1650 = vmatprep.subr.mxu0 0.0
    %1651 = vmatpush1.msra.mxu0 0.0
    %1652 = vmatprep.subr.mxu0 0.0
    %1653 = vmatpush1.msra.mxu0 0.0
    %1654 = vmatprep.subr.mxu0 0.0
    %1655 = vmatpush1.msra.mxu0 0.0
    %1656 = vmatprep.subr.mxu0 0.0
    %1657 = vmatpush1.msra.mxu0 0.0
    %1658 = vmatprep.subr.mxu0 0.0
    %1659 = vmatpush1.msra.mxu0 0.0
    %1660 = vmatprep.subr.mxu0 0.0
    %1661 = vmatpush1.msra.mxu0 0.0
    %1662 = vmatprep.subr.mxu0 0.0
    %1663 = vmatpush1.msra.mxu0 0.0
    %1664 = vmatprep.subr.mxu0 0.0
    %1665 = vmatpush1.msra.mxu0 0.0
    %1666 = vmatprep.subr.mxu0 0.0
    %1667 = vmatpush1.msra.mxu0 0.0
    %1668 = vmatprep.subr.mxu0 0.0
    %1669 = vmatpush1.msra.mxu0 0.0
    %1670 = vmatprep.mubr.f32.mxu0 0.0
    %1671 = vmatmul.mubr.f32.gmra.mrb[0].mxu0 %v1604
    %v1672 = vpop.f32.mrb[0].mxu0
    %v1673 = vadd.f32 0.0, %v1672
    %v1674 = vpop.f32.mrb[0].mxu0
    %1675 = vdwg.mxu0
    %v1677 = vrot.slane %v1673, 6
    %v1679 = vadd.f32 %v1079, %v1677
    %v1680 = vxor.u32 %v1679, 2147483648
    %v1681 = vmul.f32 %v1680, 1.442695
    %v1682 = vpow.pop %v1681
    %v1683 = vadd.f32 %v1682, 1.0
    %v1684 = vrcp.pop %v1683
    %v1685 = vmul.f32 1.0, %v1684
    %v1686 = vtanh.pop %v1679
    %v1688 = vrot.slane %v1594, 6
    %v1690 = vmul.f32 %v1685, %v1688
    %1692 = vrot.lane.b32.xlu0 %v1686, 64
    %v1693 = vpop.permute.xlu0 %1692
    %v1695 = vmul.f32 %v1685, %v1693
    %1697 = vrot.lane.b32.xlu0 %v1695, 32
    %v1698 = vpop.permute.xlu0 %1697
    %v1700 = vadd.f32 %v1690, %v1698
    %v1701 = vtanh.pop %v1700
    %1703 = vrot.lane.b32.xlu0 %v1701, 64
    %v1704 = vpop.permute.xlu0 %1703
    %v1706 = vmul.f32 %v1685, %v1704
    %v1708 = vrot.slane %v1706, 2
    %1709 = vrot.lane.b32.xlu0 %v1708, 32
    %v1710 = vpop.permute.xlu0 %1709
    %v1711 = vsel %vm130, %v1710, 0
    %1713 = vmatprep.subr.mxu0 0.0
    %1714 = vmatpush1.msra.mxu0 %v986
    %1715 = vmatprep.subr.mxu0 0.0
    %1716 = vmatpush1.msra.mxu0 %v987
    %1717 = vmatprep.subr.mxu0 0.0
    %1718 = vmatpush1.msra.mxu0 %v988
    %1719 = vmatprep.subr.mxu0 0.0
    %1720 = vmatpush1.msra.mxu0 %v989
    %1721 = vmatprep.subr.mxu0 0.0
    %1722 = vmatpush1.msra.mxu0 0.0
    %1723 = vmatprep.subr.mxu0 0.0
    %1724 = vmatpush1.msra.mxu0 0.0
    %1725 = vmatprep.subr.mxu0 0.0
    %1726 = vmatpush1.msra.mxu0 0.0
    %1727 = vmatprep.subr.mxu0 0.0
    %1728 = vmatpush1.msra.mxu0 0.0
    %1729 = vmatprep.subr.mxu0 0.0
    %1730 = vmatpush1.msra.mxu0 0.0
    %1731 = vmatprep.subr.mxu0 0.0
    %1732 = vmatpush1.msra.mxu0 0.0
    %1733 = vmatprep.subr.mxu0 0.0
    %1734 = vmatpush1.msra.mxu0 0.0
    %1735 = vmatprep.subr.mxu0 0.0
    %1736 = vmatpush1.msra.mxu0 0.0
    %1737 = vmatprep.subr.mxu0 0.0
    %1738 = vmatpush1.msra.mxu0 0.0
    %1739 = vmatprep.subr.mxu0 0.0
    %1740 = vmatpush1.msra.mxu0 0.0
    %1741 = vmatprep.subr.mxu0 0.0
    %1742 = vmatpush1.msra.mxu0 0.0
    %1743 = vmatprep.subr.mxu0 0.0
    %1744 = vmatpush1.msra.mxu0 0.0
    %1745 = vmatprep.subr.mxu0 0.0
    %1746 = vmatpush1.msra.mxu0 0.0
    %1747 = vmatprep.subr.mxu0 0.0
    %1748 = vmatpush1.msra.mxu0 0.0
    %1749 = vmatprep.subr.mxu0 0.0
    %1750 = vmatpush1.msra.mxu0 0.0
    %1751 = vmatprep.subr.mxu0 0.0
    %1752 = vmatpush1.msra.mxu0 0.0
    %1753 = vmatprep.subr.mxu0 0.0
    %1754 = vmatpush1.msra.mxu0 0.0
    %1755 = vmatprep.subr.mxu0 0.0
    %1756 = vmatpush1.msra.mxu0 0.0
    %1757 = vmatprep.subr.mxu0 0.0
    %1758 = vmatpush1.msra.mxu0 0.0
    %1759 = vmatprep.subr.mxu0 0.0
    %1760 = vmatpush1.msra.mxu0 0.0
    %1761 = vmatprep.subr.mxu0 0.0
    %1762 = vmatpush1.msra.mxu0 0.0
    %1763 = vmatprep.subr.mxu0 0.0
    %1764 = vmatpush1.msra.mxu0 0.0
    %1765 = vmatprep.subr.mxu0 0.0
    %1766 = vmatpush1.msra.mxu0 0.0
    %1767 = vmatprep.subr.mxu0 0.0
    %1768 = vmatpush1.msra.mxu0 0.0
    %1769 = vmatprep.subr.mxu0 0.0
    %1770 = vmatpush1.msra.mxu0 0.0
    %1771 = vmatprep.subr.mxu0 0.0
    %1772 = vmatpush1.msra.mxu0 0.0
    %1773 = vmatprep.subr.mxu0 0.0
    %1774 = vmatpush1.msra.mxu0 0.0
    %1775 = vmatprep.subr.mxu0 0.0
    %1776 = vmatpush1.msra.mxu0 0.0
    %1777 = vmatprep.mubr.f32.mxu0 0.0
    %1778 = vmatmul.mubr.f32.gmra.mrb[0].mxu0 %v1711
    %v1779 = vpop.f32.mrb[0].mxu0
    %v1780 = vadd.f32 0.0, %v1779
    %v1781 = vpop.f32.mrb[0].mxu0
    %1782 = vdwg.mxu0
    %v1784 = vrot.slane %v1780, 4
    %v1786 = vadd.f32 %v1079, %v1784
    %v1787 = vxor.u32 %v1786, 2147483648
    %v1788 = vmul.f32 %v1787, 1.442695
    %v1789 = vpow.pop %v1788
    %v1790 = vadd.f32 %v1789, 1.0
    %v1791 = vrcp.pop %v1790
    %v1792 = vmul.f32 1.0, %v1791
    %v1793 = vtanh.pop %v1786
    %v1795 = vrot.slane %v1700, 6
    %v1797 = vmul.f32 %v1792, %v1795
    %1799 = vrot.lane.b32.xlu0 %v1793, 64
    %v1800 = vpop.permute.xlu0 %1799
    %v1802 = vmul.f32 %v1792, %v1800
    %1804 = vrot.lane.b32.xlu0 %v1802, 32
    %v1805 = vpop.permute.xlu0 %1804
    %v1807 = vadd.f32 %v1797, %v1805
    %v1808 = vtanh.pop %v1807
    %1810 = vrot.lane.b32.xlu0 %v1808, 64
    %v1811 = vpop.permute.xlu0 %1810
    %v1813 = vmul.f32 %v1792, %v1811
    %v1815 = vrot.slane %v1813, 4
    %1816 = vrot.lane.b32.xlu0 %v1815, 32
    %v1817 = vpop.permute.xlu0 %1816
    %v1818 = vsel %vm130, %v1817, 0
    %1820 = vmatprep.subr.mxu0 0.0
    %1821 = vmatpush1.msra.mxu0 %v986
    %1822 = vmatprep.subr.mxu0 0.0
    %1823 = vmatpush1.msra.mxu0 %v987
    %1824 = vmatprep.subr.mxu0 0.0
    %1825 = vmatpush1.msra.mxu0 %v988
    %1826 = vmatprep.subr.mxu0 0.0
    %1827 = vmatpush1.msra.mxu0 %v989
    %1828 = vmatprep.subr.mxu0 0.0
    %1829 = vmatpush1.msra.mxu0 0.0
    %1830 = vmatprep.subr.mxu0 0.0
    %1831 = vmatpush1.msra.mxu0 0.0
    %1832 = vmatprep.subr.mxu0 0.0
    %1833 = vmatpush1.msra.mxu0 0.0
    %1834 = vmatprep.subr.mxu0 0.0
    %1835 = vmatpush1.msra.mxu0 0.0
    %1836 = vmatprep.subr.mxu0 0.0
    %1837 = vmatpush1.msra.mxu0 0.0
    %1838 = vmatprep.subr.mxu0 0.0
    %1839 = vmatpush1.msra.mxu0 0.0
    %1840 = vmatprep.subr.mxu0 0.0
    %1841 = vmatpush1.msra.mxu0 0.0
    %1842 = vmatprep.subr.mxu0 0.0
    %1843 = vmatpush1.msra.mxu0 0.0
    %1844 = vmatprep.subr.mxu0 0.0
    %1845 = vmatpush1.msra.mxu0 0.0
    %1846 = vmatprep.subr.mxu0 0.0
    %1847 = vmatpush1.msra.mxu0 0.0
    %1848 = vmatprep.subr.mxu0 0.0
    %1849 = vmatpush1.msra.mxu0 0.0
    %1850 = vmatprep.subr.mxu0 0.0
    %1851 = vmatpush1.msra.mxu0 0.0
    %1852 = vmatprep.subr.mxu0 0.0
    %1853 = vmatpush1.msra.mxu0 0.0
    %1854 = vmatprep.subr.mxu0 0.0
    %1855 = vmatpush1.msra.mxu0 0.0
    %1856 = vmatprep.subr.mxu0 0.0
    %1857 = vmatpush1.msra.mxu0 0.0
    %1858 = vmatprep.subr.mxu0 0.0
    %1859 = vmatpush1.msra.mxu0 0.0
    %1860 = vmatprep.subr.mxu0 0.0
    %1861 = vmatpush1.msra.mxu0 0.0
    %1862 = vmatprep.subr.mxu0 0.0
    %1863 = vmatpush1.msra.mxu0 0.0
    %1864 = vmatprep.subr.mxu0 0.0
    %1865 = vmatpush1.msra.mxu0 0.0
    %1866 = vmatprep.subr.mxu0 0.0
    %1867 = vmatpush1.msra.mxu0 0.0
    %1868 = vmatprep.subr.mxu0 0.0
    %1869 = vmatpush1.msra.mxu0 0.0
    %1870 = vmatprep.subr.mxu0 0.0
    %1871 = vmatpush1.msra.mxu0 0.0
    %1872 = vmatprep.subr.mxu0 0.0
    %1873 = vmatpush1.msra.mxu0 0.0
    %1874 = vmatprep.subr.mxu0 0.0
    %1875 = vmatpush1.msra.mxu0 0.0
    %1876 = vmatprep.subr.mxu0 0.0
    %1877 = vmatpush1.msra.mxu0 0.0
    %1878 = vmatprep.subr.mxu0 0.0
    %1879 = vmatpush1.msra.mxu0 0.0
    %1880 = vmatprep.subr.mxu0 0.0
    %1881 = vmatpush1.msra.mxu0 0.0
    %1882 = vmatprep.subr.mxu0 0.0
    %1883 = vmatpush1.msra.mxu0 0.0
    %1884 = vmatprep.mubr.f32.mxu0 0.0
    %1885 = vmatmul.mubr.f32.gmra.mrb[0].mxu0 %v1818
    %v1886 = vpop.f32.mrb[0].mxu0
    %v1887 = vadd.f32 0.0, %v1886
    %v1888 = vpop.f32.mrb[0].mxu0
    %1889 = vdwg.mxu0
    %v1891 = vrot.slane %v1887, 2
    %v1893 = vadd.f32 %v1079, %v1891
    %v1894 = vxor.u32 %v1893, 2147483648
    %v1895 = vmul.f32 %v1894, 1.442695
    %v1896 = vpow.pop %v1895
    %v1897 = vadd.f32 %v1896, 1.0
    %v1898 = vrcp.pop %v1897
    %v1899 = vmul.f32 1.0, %v1898
    %v1900 = vtanh.pop %v1893
    %v1902 = vrot.slane %v1807, 6
    %v1904 = vmul.f32 %v1899, %v1902
    %1906 = vrot.lane.b32.xlu0 %v1900, 64
    %v1907 = vpop.permute.xlu0 %1906
    %v1909 = vmul.f32 %v1899, %v1907
    %1911 = vrot.lane.b32.xlu0 %v1909, 32
    %v1912 = vpop.permute.xlu0 %1911
    %v1914 = vadd.f32 %v1904, %v1912
    %v1915 = vtanh.pop %v1914
    %1917 = vrot.lane.b32.xlu0 %v1915, 64
    %v1918 = vpop.permute.xlu0 %1917
    %v1920 = vmul.f32 %v1899, %v1918
    %1922 = vrot.lane.b32.xlu0 %v1284, 64
    %v1923 = vpop.permute.xlu0 %1922
    %1925 = vrot.lane.b32.xlu0 %v1391, 96
    %v1926 = vpop.permute.xlu0 %1925
    %1930 = vrot.lane.b32.xlu0 %v1708, 64
    %v1931 = vpop.permute.xlu0 %1930
    %1933 = vrot.lane.b32.xlu0 %v1815, 96
    %v1934 = vpop.permute.xlu0 %1933
    %v1937 = vrot.slane %v1920, 6
    %v1939 = vsel %vm130, %v1179, %v1923
    %vm1940 = vcmask 523264
    %v1941 = vsel %vm1940, %v1939, %v1926
    %vm1942 = vcmask 785408
    %v1943 = vsel %vm1942, %v1941, %v1498
    %v1944 = vsel %vm130, %v1603, %v1931
    %v1945 = vsel %vm1940, %v1944, %v1934
    %v1946 = vsel %vm1942, %v1945, %v1937
    %v1947 = vld [vmem:[%s7] sm:$0xff]
    %v1948 = vld [vmem:[%s7 + $0x8] sm:$0xff]
    %v1949 = vld [vmem:[%s7 + $0x10] sm:$0xff]
    %v1950 = vld [vmem:[%s7 + $0x18] sm:$0xff]
    %v1951 = vld [vmem:[%s7 + $0x20] sm:$0xff]
    %v1952 = vld [vmem:[%s7 + $0x28] sm:$0xff]
    %v1953 = vld [vmem:[%s7 + $0x30] sm:$0xff]
    %v1954 = vld [vmem:[%s7 + $0x38] sm:$0xff]
    %v1955 = vld [vmem:[%s7 + $0x40] sm:$0xff]
    %v1956 = vld [vmem:[%s7 + $0x48] sm:$0xff]
    %v1957 = vld [vmem:[%s7 + $0x50] sm:$0xff]
    %v1958 = vld [vmem:[%s7 + $0x58] sm:$0xff]
    %v1959 = vld [vmem:[%s7 + $0x60] sm:$0xff]
    %v1960 = vld [vmem:[%s7 + $0x68] sm:$0xff]
    %v1961 = vld [vmem:[%s7 + $0x70] sm:$0xff]
    %v1962 = vld [vmem:[%s7 + $0x78] sm:$0xff]
    %v1963 = vld [vmem:[%s7 + $0x80] sm:$0xff]
    %v1964 = vld [vmem:[%s7 + $0x88] sm:$0xff]
    %v1965 = vld [vmem:[%s7 + $0x90] sm:$0xff]
    %v1966 = vld [vmem:[%s7 + $0x98] sm:$0xff]
    %v1967 = vld [vmem:[%s7 + $0xa0] sm:$0xff]
    %v1968 = vld [vmem:[%s7 + $0xa8] sm:$0xff]
    %v1969 = vld [vmem:[%s7 + $0xb0] sm:$0xff]
    %v1970 = vld [vmem:[%s7 + $0xb8] sm:$0xff]
    %v1971 = vld [vmem:[%s7 + $0xc0] sm:$0xff]
    %v1972 = vld [vmem:[%s7 + $0xc8] sm:$0xff]
    %v1973 = vld [vmem:[%s7 + $0xd0] sm:$0xff]
    %v1974 = vld [vmem:[%s7 + $0xd8] sm:$0xff]
    %v1975 = vld [vmem:[%s7 + $0xe0] sm:$0xff]
    %v1976 = vld [vmem:[%s7 + $0xe8] sm:$0xff]
    %v1977 = vld [vmem:[%s7 + $0xf0] sm:$0xff]
    %v1978 = vld [vmem:[%s7 + $0xf8] sm:$0xff]
    %v1979 = vld [vmem:[%s8] sm:$0x1]
    %v1981 = vlaneseq
    %v1982 = vshrl.u32 %v1981, 7
    %v1983 = vsub.s32 0, %v1982
    %v1984 = vrot.slane %v1979, %v1983
    %1986 = vmatprep.subr.mxu0 0.0
    %1987 = vmatpush1.msra.mxu0 %v1947
    %1988 = vmatprep.subr.mxu0 0.0
    %1989 = vmatpush1.msra.mxu0 %v1948
    %1990 = vmatprep.subr.mxu0 0.0
    %1991 = vmatpush1.msra.mxu0 %v1949
    %1992 = vmatprep.subr.mxu0 0.0
    %1993 = vmatpush1.msra.mxu0 %v1950
    %1994 = vmatprep.subr.mxu0 0.0
    %1995 = vmatpush1.msra.mxu0 %v1951
    %1996 = vmatprep.subr.mxu0 0.0
    %1997 = vmatpush1.msra.mxu0 %v1952
    %1998 = vmatprep.subr.mxu0 0.0
    %1999 = vmatpush1.msra.mxu0 %v1953
    %2000 = vmatprep.subr.mxu0 0.0
    %2001 = vmatpush1.msra.mxu0 %v1954
    %2002 = vmatprep.subr.mxu0 0.0
    %2003 = vmatpush1.msra.mxu0 %v1955
    %2004 = vmatprep.subr.mxu0 0.0
    %2005 = vmatpush1.msra.mxu0 %v1956
    %2006 = vmatprep.subr.mxu0 0.0
    %2007 = vmatpush1.msra.mxu0 %v1957
    %2008 = vmatprep.subr.mxu0 0.0
    %2009 = vmatpush1.msra.mxu0 %v1958
    %2010 = vmatprep.subr.mxu0 0.0
    %2011 = vmatpush1.msra.mxu0 %v1959
    %2012 = vmatprep.subr.mxu0 0.0
    %2013 = vmatpush1.msra.mxu0 %v1960
    %2014 = vmatprep.subr.mxu0 0.0
    %2015 = vmatpush1.msra.mxu0 %v1961
    %2016 = vmatprep.subr.mxu0 0.0
    %2017 = vmatpush1.msra.mxu0 %v1962
    %2018 = vmatprep.subr.mxu0 0.0
    %2019 = vmatpush1.msra.mxu0 %v1963
    %2020 = vmatprep.subr.mxu0 0.0
    %2021 = vmatpush1.msra.mxu0 %v1964
    %2022 = vmatprep.subr.mxu0 0.0
    %2023 = vmatpush1.msra.mxu0 %v1965
    %2024 = vmatprep.subr.mxu0 0.0
    %2025 = vmatpush1.msra.mxu0 %v1966
    %2026 = vmatprep.subr.mxu0 0.0
    %2027 = vmatpush1.msra.mxu0 %v1967
    %2028 = vmatprep.subr.mxu0 0.0
    %2029 = vmatpush1.msra.mxu0 %v1968
    %2030 = vmatprep.subr.mxu0 0.0
    %2031 = vmatpush1.msra.mxu0 %v1969
    %2032 = vmatprep.subr.mxu0 0.0
    %2033 = vmatpush1.msra.mxu0 %v1970
    %2034 = vmatprep.subr.mxu0 0.0
    %2035 = vmatpush1.msra.mxu0 %v1971
    %2036 = vmatprep.subr.mxu0 0.0
    %2037 = vmatpush1.msra.mxu0 %v1972
    %2038 = vmatprep.subr.mxu0 0.0
    %2039 = vmatpush1.msra.mxu0 %v1973
    %2040 = vmatprep.subr.mxu0 0.0
    %2041 = vmatpush1.msra.mxu0 %v1974
    %2042 = vmatprep.subr.mxu0 0.0
    %2043 = vmatpush1.msra.mxu0 %v1975
    %2044 = vmatprep.subr.mxu0 0.0
    %2045 = vmatpush1.msra.mxu0 %v1976
    %2046 = vmatprep.subr.mxu0 0.0
    %2047 = vmatpush1.msra.mxu0 %v1977
    %2048 = vmatprep.subr.mxu0 0.0
    %2049 = vmatpush1.msra.mxu0 %v1978
    %2050 = vmatprep.mubr.f32.mxu0 %v1946
    %2051 = vmatmul.mubr.f32.gmra.mrb[0].mxu0 %v1943
    %v2052 = vpop.f32.mrb[0].mxu0
    %v2053 = vadd.f32 %v1984, %v2052
    %v2054 = vpop.f32.mrb[0].mxu0
    %2055 = vdwg.mxu0
    %vm2056 = vcmask 9216
    %2057 = vst.msk [vmem:[#allocation2] sm:$0x3] %vm2056, %v2053
    // Predicated region
    $region38: #{test_model_2_forward.1} parent=1 // pred_check
      _
    $region39: #{test_model_2_forward.1} parent=1 // pred_check_branch
      %2059 = sbr.rel (0) target = $region41
    $region40: #{test_model_2_forward.1} parent=1 // pred_region
      %s2061 = ssub.s32 32, 32
      %2062 = vsyncadd [#allocation3], %s2061
      %s2064 = sshll.u32 [#allocation2], 4
      %s2065 = int_to_ptr.vmem [resolvable:$true] %s2064
      %2067 = dma.vmem_to_hbm [thread:$0]  %s2065, 32, %s9, [#allocation3]
    $region41: #{test_model_2_forward.1} parent=1 // pred_fallthru
      _
    // Predicated region
    $region42: #{test_model_2_forward.1} parent=1 // pred_check
      _
    $region43: #{test_model_2_forward.1} parent=1 // pred_check_branch
      %2069 = sbr.rel (0) target = $region45
    $region44: #{test_model_2_forward.1} parent=1 // pred_region
      %2070 = dma.done [#allocation3], 32
    $region45: #{test_model_2_forward.1} parent=1 // pred_fallthru
      _
    %2071 = vsyncpa [#allocation3], 1

</llo_original>
